<compile_context>
chip_gen: v6e
topology: v6e:2x2x1
jax: 0.10.0
libtpu: 0.0.40
codegen_flags: <defaults>
</compile_context>

<pallas_src>
import functools

import jax
import jax.numpy as jnp
from jax.experimental import pallas as pl
from jax.experimental.pallas import tpu as pltpu


def reverse_sage_kernel(x_ref, a_ref, wA_ref, bA_ref, wlin_ref, blin_ref,
                        w1_ref, b1_ref, bn_ref, o_ref, *, tb, n, cin, cp):
    x = x_ref[...]                                      # (tb, n, cin) f32
    a = a_ref[...].astype(jnp.bfloat16)                 # int8 0/1 -> bf16 (exact)

    # One MXU pass: A @ [X | 1] gives the mean-aggregation numerator and deg.
    xb = jnp.concatenate(
        [x.astype(jnp.bfloat16), jnp.ones((tb, n, 1), jnp.bfloat16)], axis=-1)
    agg_full = jnp.einsum("bij,bjc->bic", a, xb,
                          preferred_element_type=jnp.float32)   # (tb, n, cin+1)
    deg = agg_full[:, :, cin:cin + 1]
    inv_deg = pl.reciprocal(jnp.maximum(deg, 1.0), approx=True)  # EUP slot
    agg_x = agg_full[:, :, :cin] * inv_deg

    # Flatten batch x node into one large M dimension for the MXU.
    xf = x.reshape(tb * n, cin)
    aggf = agg_x.reshape(tb * n, cin)

    bn = bn_ref[...]                                    # (tb*n, 4) packed BN
    s2, t2 = bn[:, 0:1], bn[:, 1:2]
    s1, t1 = bn[:, 2:3], bn[:, 3:4]

    # Fused sage2 + res_sage, K-stacked over [agg_x | x]; res half first so both
    # static lane slices start on a 128-lane boundary.
    t = (jnp.dot(jnp.concatenate([aggf, xf], axis=1), wA_ref[...],
                 preferred_element_type=jnp.float32) + bA_ref[...])
    res = t[:, :cp]                   # res_sage out (kept live; spills at big tb*n)
    h = jnp.maximum(t[:, cp:cp + cin], 0.0)             # ReLU(sage2)
    h = h * s2 + t2                                     # bn2 (eval); dropout == id

    # lin: Linear(Cin, Cin)
    h = jnp.dot(h, wlin_ref[...],
                preferred_element_type=jnp.float32) + blin_ref[...]

    # sage1: mean aggregation of the lin output, then K-fused [agg_h | h] matmul.
    agg_h = jnp.einsum("bij,bjc->bic", a,
                       h.reshape(tb, n, cin).astype(jnp.bfloat16),
                       preferred_element_type=jnp.float32) * inv_deg
    h1 = (jnp.dot(jnp.concatenate([agg_h.reshape(tb * n, cin), h], axis=1),
                  w1_ref[...], preferred_element_type=jnp.float32) + b1_ref[...])
    h1 = jnp.maximum(h1, 0.0) * s1 + t1                 # ReLU + bn1 (eval)

    # Lane-dense bf16 store (Cp is a multiple of 128; pad sliced off in wrapper).
    o_ref[...] = (h1 + res).reshape(tb, n, cp).astype(o_ref.dtype)


def _vmem_budget():
    """(working-set budget for tb selection, vmem_limit_bytes) per generation."""
    try:
        kind = jax.devices()[0].device_kind.lower()
    except Exception:
        kind = ""
    if "v6" in kind:                       # 128 MiB physical VMEM
        return 80 * 1024 * 1024, 100 * 1024 * 1024
    # Conservative default: safe on v7x (64 MiB physical) and v5e scoped VMEM.
    return 36 * 1024 * 1024, 48 * 1024 * 1024


def _estimate_vmem(tb, n, cin, cp):
    """Rough per-step VMEM footprint (pipeline buffers + weights + live values)."""
    lane = lambda c: ((c + 127) // 128) * 128
    sub = lambda r, m: ((r + m - 1) // m) * m
    rows = tb * n
    f32, bf16, i8 = 4, 2, 1
    a_blk = tb * sub(n, 32) * lane(n) * i8
    x_blk = tb * sub(n, 8) * lane(cin) * f32
    o_blk = tb * sub(n, 16) * cp * bf16
    bn_blk = sub(rows, 8) * 128 * f32
    pipelined = 2 * (a_blk + x_blk + o_blk + bn_blk)        # double-buffered
    weights = 2 * ((2 * cin) * lane(cp + cin) + (2 * cin) * cp
                   + cin * lane(cin) + 3 * lane(cp + cin)) * f32
    live = (tb * sub(n, 16) * lane(n) * bf16                # bf16 A value
            + rows * lane(cp + cin) * f32                   # t
            + rows * cp * f32 * 2                           # res, h1
            + rows * lane(cin) * f32 * 5)                   # x/agg/h temporaries
    return pipelined + weights + live


def reverse_sage_block(x, a, p, *, tb=None):
    B, N, Cin = x.shape
    Cout = p["w1r"].shape[1]

    # ---- pad N to a sublane multiple so in-kernel reshapes stay layout-free --
    Np = ((N + 7) // 8) * 8
    if Np != N:
        x = jnp.pad(x, ((0, 0), (0, Np - N), (0, 0)))
        a = jnp.pad(a, ((0, 0), (0, Np - N), (0, Np - N)))

    # ---- lane-dense output: pad Cout to a multiple of 128 (bf16 store) ------
    Cp = ((Cout + 127) // 128) * 128
    pad_c = lambda w: jnp.pad(w, ((0, 0), (0, Cp - Cout)))
    w1r, w1o, b1 = pad_c(p["w1r"]), pad_c(p["w1o"]), pad_c(p["b1"])
    wrr, wro, brr = pad_c(p["wrr"]), pad_c(p["wro"]), pad_c(p["brr"])

    # ---- choose tb: aim for tb*Np ~ 256 MXU rows, bounded by the VMEM budget.
    # (If B >= 2*tb the grid automatically stays >= 2 for v7x's two cores.)
    budget, vmem_limit = _vmem_budget()
    if tb is None:
        tb = max(1, min(B, -(-256 // Np)))
    tb = max(1, min(tb, B))
    while tb > 1 and _estimate_vmem(tb, Np, Cin, Cp) > budget:
        tb = max(1, tb // 2)

    Bp = ((B + tb - 1) // tb) * tb
    if Bp != B:
        x = jnp.pad(x, ((0, Bp - B), (0, 0), (0, 0)))
        a = jnp.pad(a, ((0, Bp - B), (0, 0), (0, 0)))

    # ---- fuse sage2 + res_sage outputs and K-stack both matmul pairs --------
    wA = jnp.concatenate(
        [jnp.concatenate([wrr, p["w2r"]], axis=1),      # rows hit by agg operand
         jnp.concatenate([wro, p["w2o"]], axis=1)],     # rows hit by root operand
        axis=0)                                         # (2*Cin, Cp+Cin)
    bA = jnp.concatenate([brr, p["b2"]], axis=1)        # (1, Cp+Cin)
    w1 = jnp.concatenate([w1r, w1o], axis=0)            # (2*Cin, Cp)

    # ---- packed per-node BN scale/shift, tiled to the fused row axis --------
    pad_n = lambda v: jnp.pad(v, ((0, Np - N), (0, 0)))
    bn = jnp.concatenate([pad_n(p["bn2_scale"]), pad_n(p["bn2_shift"]),
                          pad_n(p["bn1_scale"]), pad_n(p["bn1_shift"])], axis=1)
    bn = jnp.tile(bn, (tb, 1))                          # (tb*Np, 4)

    # ---- adjacency as int8: exact for 0/1, quarters the dominant DMA vs f32 -
    a_i8 = a.astype(jnp.int8)

    kernel = functools.partial(reverse_sage_kernel, tb=tb, n=Np, cin=Cin, cp=Cp)

    def const2(shape):
        # small 2-D operand, constant block index, resident across the grid
        return pl.BlockSpec(shape, lambda b: (0, 0))

    in_specs = [
        pl.BlockSpec((tb, Np, Cin), lambda b: (b, 0, 0)),   # X   (f32)
        pl.BlockSpec((tb, Np, Np),  lambda b: (b, 0, 0)),   # A   (int8)
        const2((2 * Cin, Cp + Cin)),                        # wA  (sage2+res, K-stacked)
        const2((1, Cp + Cin)),                              # bA
        const2((Cin, Cin)), const2((1, Cin)),               # lin
        const2((2 * Cin, Cp)), const2((1, Cp)),             # sage1 (K-stacked)
        const2((tb * Np, 4)),                               # packed BN scale/shift
    ]
    out_spec = pl.BlockSpec((tb, Np, Cp), lambda b: (b, 0, 0))

    out = pl.pallas_call(
        kernel,
        out_shape=jax.ShapeDtypeStruct((Bp, Np, Cp), jnp.bfloat16),
        grid_spec=pltpu.PrefetchScalarGridSpec(
            num_scalar_prefetch=0,
            grid=(Bp // tb,),
            in_specs=in_specs,
            out_specs=out_spec,
        ),
        compiler_params=pltpu.CompilerParams(
            dimension_semantics=("parallel",),
            vmem_limit_bytes=vmem_limit,
        ),
    )(x, a_i8, wA, bA, p["wlin"], p["blin"], w1, b1, bn)

    return out[:B, :N, :Cout].astype(jnp.float32)


def make_params(key, in_channels, out_channels, num_ft):
    ks = jax.random.split(key, 20)
    u = lambda k, shape, s=0.1: jax.random.uniform(k, shape, jnp.float32, -s, s)
    eps = 1e-5

    # BatchNorm1d(num_ft) folded params (inference / running statistics).
    def bn(kg, kb, km, kv):
        gamma = 1.0 + u(kg, (num_ft,))
        beta = u(kb, (num_ft,))
        mean = u(km, (num_ft,))
        var = 1.0 + jnp.abs(u(kv, (num_ft,)))
        scale = gamma / jnp.sqrt(var + eps)
        shift = beta - mean * scale
        return scale.reshape(num_ft, 1), shift.reshape(num_ft, 1)

    bn2_scale, bn2_shift = bn(ks[0], ks[1], ks[2], ks[3])
    bn1_scale, bn1_shift = bn(ks[4], ks[5], ks[6], ks[7])

    return dict(
        # sage2: DenseSAGEConv(Cin, Cin) -> lin_rel (bias) + lin_root (no bias)
        w2r=u(ks[8], (in_channels, in_channels)),
        w2o=u(ks[9], (in_channels, in_channels)),
        b2=u(ks[10], (1, in_channels)),
        bn2_scale=bn2_scale, bn2_shift=bn2_shift,
        # lin: Linear(Cin, Cin)
        wlin=u(ks[11], (in_channels, in_channels)),
        blin=u(ks[12], (1, in_channels)),
        # sage1: DenseSAGEConv(Cin, Cout)
        w1r=u(ks[13], (in_channels, out_channels)),
        w1o=u(ks[14], (in_channels, out_channels)),
        b1=u(ks[15], (1, out_channels)),
        bn1_scale=bn1_scale, bn1_shift=bn1_shift,
        # res_sage: DenseSAGEConv(Cin, Cout)
        wrr=u(ks[16], (in_channels, out_channels)),
        wro=u(ks[17], (in_channels, out_channels)),
        brr=u(ks[18], (1, out_channels)),
    )


def reference(x, a, p):
    # pure-JAX reference (same inference semantics, exact f32 everywhere)
    deg = jnp.maximum(jnp.sum(a, axis=-1, keepdims=True), 1.0)
    agg_x = jnp.einsum("bij,bjc->bic", a, x) / deg
    h = agg_x @ p["w2r"] + x @ p["w2o"] + p["b2"]
    h = jnp.maximum(h, 0.0)
    h = h * p["bn2_scale"][None] + p["bn2_shift"][None]
    h = h @ p["wlin"] + p["blin"]
    agg_h = jnp.einsum("bij,bjc->bic", a, h) / deg
    h1 = agg_h @ p["w1r"] + h @ p["w1o"] + p["b1"]
    h1 = jnp.maximum(h1, 0.0)
    h1 = h1 * p["bn1_scale"][None] + p["bn1_shift"][None]
    res = agg_x @ p["wrr"] + x @ p["wro"] + p["brr"]
    return h1 + res


if __name__ == "__main__":
    # num_ft == N (node count), matching BatchNorm1d(num_ft) on (B, N, C) input.
    B, N, Cin, Cout = 6, 8, 16, 32
    key = jax.random.PRNGKey(0)
    kx, ka, kp = jax.random.split(key, 3)

    x = jax.random.normal(kx, (B, N, Cin), jnp.float32)
    # dense 0/1 adjacency with self loops
    a = (jax.random.uniform(ka, (B, N, N)) > 0.5).astype(jnp.float32)
    a = jnp.maximum(a, jnp.eye(N, dtype=jnp.float32)[None])

    params = make_params(kp, Cin, Cout, N)

    out = reverse_sage_block(x, a, params)
    out = jax.block_until_ready(out)

    ref = reference(x, a, params)
    assert out.shape == (B, N, Cout)
    err = float(jnp.max(jnp.abs(out - ref)))
    # Tolerance accounts for bf16 aggregation operands, approx reciprocal of the
    # (integer) degrees, and the bf16 output store; A itself stays exact (0/1).
    assert jnp.allclose(out, ref, atol=2e-2, rtol=1e-2), err
    print("KERNEL_OK")
</pallas_src>

<mosaic_0001>
module attributes {stable_mosaic.version = 11 : i64} {
  func.func @reverse_sage_kernel(%arg0: i32, %arg1: memref<6x8x16xf32, #tpu.memory_space<vmem>>, %arg2: memref<6x8x8xi8, #tpu.memory_space<vmem>>, %arg3: memref<32x144xf32, #tpu.memory_space<vmem>>, %arg4: memref<1x144xf32, #tpu.memory_space<vmem>>, %arg5: memref<16x16xf32, #tpu.memory_space<vmem>>, %arg6: memref<1x16xf32, #tpu.memory_space<vmem>>, %arg7: memref<32x128xf32, #tpu.memory_space<vmem>>, %arg8: memref<1x128xf32, #tpu.memory_space<vmem>>, %arg9: memref<48x4xf32, #tpu.memory_space<vmem>>, %arg10: memref<6x8x128xbf16, #tpu.memory_space<vmem>>) attributes {dimension_semantics = [#tpu.dimension_semantics<parallel>], iteration_bounds = array<i64: 1>, scalar_prefetch = 0 : i64, scratch_operands = 0 : i64, tpu.core_type = #tpu.core_type<tc>, window_params = [{transform_indices = @transform_0, window_bounds = array<i64: 6, 8, 16>}, {transform_indices = @transform_1, window_bounds = array<i64: 6, 8, 8>}, {pipeline_mode = #tpu.pipeline_mode<synchronous>, transform_indices = @transform_2, window_bounds = array<i64: 32, 144>}, {pipeline_mode = #tpu.pipeline_mode<synchronous>, transform_indices = @transform_3, window_bounds = array<i64: 1, 144>}, {pipeline_mode = #tpu.pipeline_mode<synchronous>, transform_indices = @transform_4, window_bounds = array<i64: 16, 16>}, {pipeline_mode = #tpu.pipeline_mode<synchronous>, transform_indices = @transform_5, window_bounds = array<i64: 1, 16>}, {pipeline_mode = #tpu.pipeline_mode<synchronous>, transform_indices = @transform_6, window_bounds = array<i64: 32, 128>}, {pipeline_mode = #tpu.pipeline_mode<synchronous>, transform_indices = @transform_7, window_bounds = array<i64: 1, 128>}, {pipeline_mode = #tpu.pipeline_mode<synchronous>, transform_indices = @transform_8, window_bounds = array<i64: 48, 4>}, {transform_indices = @transform_9, window_bounds = array<i64: 6, 8, 128>}]} {
    %c0 = arith.constant 0 : index
    %c0_0 = arith.constant 0 : index
    %c0_1 = arith.constant 0 : index
    %0 = vector.load %arg1[%c0, %c0_0, %c0_1] : memref<6x8x16xf32, #tpu.memory_space<vmem>>, vector<6x8x16xf32>
    %c0_2 = arith.constant 0 : index
    %c0_3 = arith.constant 0 : index
    %c0_4 = arith.constant 0 : index
    %1 = vector.load %arg2[%c0_2, %c0_3, %c0_4] : memref<6x8x8xi8, #tpu.memory_space<vmem>>, vector<6x8x8xi8>
    %2 = arith.sitofp %1 : vector<6x8x8xi8> to vector<6x8x8xbf16>
    %3 = arith.truncf %0 : vector<6x8x16xf32> to vector<6x8x16xbf16>
    %cst = arith.constant 1.000000e+00 : bf16
    %4 = vector.broadcast %cst : bf16 to vector<6x8x1xbf16>
    %5 = tpu.concatenate %3, %4 in 2 : vector<6x8x16xbf16>, vector<6x8x1xbf16> -> vector<6x8x17xbf16>
    "tpu.trace_start"() <{level = 10 : i32, message = "bij,bjc->bic"}> : () -> ()
    %cst_5 = arith.constant dense<0.000000e+00> : vector<6x8x17xf32>
    %6 = tpu.matmul %2, %5, %cst_5 {dimension_numbers = #tpu.dot_dimension_numbers<[2], [1], [1], [2], [0, 0, 0, 1, 1, 2], [0], [0]>} : vector<6x8x8xbf16>, vector<6x8x17xbf16>, vector<6x8x17xf32> -> vector<6x8x17xf32>
    "tpu.trace_stop"() : () -> ()
    %7 = vector.extract_strided_slice %6 {offsets = [0, 0, 16], sizes = [6, 8, 1], strides = [1, 1, 1]} : vector<6x8x17xf32> to vector<6x8x1xf32>
    %cst_6 = arith.constant 1.000000e+00 : f32
    %8 = vector.broadcast %cst_6 : f32 to vector<6x8x1xf32>
    %9 = arith.maximumf %7, %8 : vector<6x8x1xf32>
    %10 = tpu.reciprocal %9 {approx = true} : vector<6x8x1xf32> -> vector<6x8x1xf32>
    %11 = vector.extract_strided_slice %6 {offsets = [0, 0, 0], sizes = [6, 8, 16], strides = [1, 1, 1]} : vector<6x8x17xf32> to vector<6x8x16xf32>
    %12 = vector.broadcast %10 : vector<6x8x1xf32> to vector<6x8x16xf32>
    %13 = arith.mulf %11, %12 : vector<6x8x16xf32>
    %14 = vector.shape_cast %0 : vector<6x8x16xf32> to vector<48x16xf32>
    %15 = vector.shape_cast %13 : vector<6x8x16xf32> to vector<48x16xf32>
    %c0_7 = arith.constant 0 : index
    %c0_8 = arith.constant 0 : index
    %16 = vector.load %arg9[%c0_7, %c0_8] : memref<48x4xf32, #tpu.memory_space<vmem>>, vector<48x4xf32>
    %17 = vector.extract_strided_slice %16 {offsets = [0, 0], sizes = [48, 1], strides = [1, 1]} : vector<48x4xf32> to vector<48x1xf32>
    %18 = vector.extract_strided_slice %16 {offsets = [0, 1], sizes = [48, 1], strides = [1, 1]} : vector<48x4xf32> to vector<48x1xf32>
    %19 = vector.extract_strided_slice %16 {offsets = [0, 2], sizes = [48, 1], strides = [1, 1]} : vector<48x4xf32> to vector<48x1xf32>
    %20 = vector.extract_strided_slice %16 {offsets = [0, 3], sizes = [48, 1], strides = [1, 1]} : vector<48x4xf32> to vector<48x1xf32>
    %21 = tpu.concatenate %15, %14 in 1 : vector<48x16xf32>, vector<48x16xf32> -> vector<48x32xf32>
    %c0_9 = arith.constant 0 : index
    %c0_10 = arith.constant 0 : index
    %22 = vector.load %arg3[%c0_9, %c0_10] : memref<32x144xf32, #tpu.memory_space<vmem>>, vector<32x144xf32>
    %cst_11 = arith.constant dense<0.000000e+00> : vector<48x144xf32>
    %23 = tpu.matmul %21, %22, %cst_11 {dimension_numbers = #tpu.dot_dimension_numbers<[1], [0], [0], [1], [0, 0, 1, 1], [], []>} : vector<48x32xf32>, vector<32x144xf32>, vector<48x144xf32> -> vector<48x144xf32>
    %c0_12 = arith.constant 0 : index
    %c0_13 = arith.constant 0 : index
    %24 = vector.load %arg4[%c0_12, %c0_13] : memref<1x144xf32, #tpu.memory_space<vmem>>, vector<1x144xf32>
    %25 = vector.broadcast %24 : vector<1x144xf32> to vector<48x144xf32>
    %26 = arith.addf %23, %25 : vector<48x144xf32>
    %27 = vector.extract_strided_slice %26 {offsets = [0, 0], sizes = [48, 128], strides = [1, 1]} : vector<48x144xf32> to vector<48x128xf32>
    %28 = vector.extract_strided_slice %26 {offsets = [0, 128], sizes = [48, 16], strides = [1, 1]} : vector<48x144xf32> to vector<48x16xf32>
    %cst_14 = arith.constant 0.000000e+00 : f32
    %29 = vector.broadcast %cst_14 : f32 to vector<48x16xf32>
    %30 = arith.maximumf %28, %29 : vector<48x16xf32>
    %31 = vector.broadcast %17 : vector<48x1xf32> to vector<48x16xf32>
    %32 = arith.mulf %30, %31 : vector<48x16xf32>
    %33 = vector.broadcast %18 : vector<48x1xf32> to vector<48x16xf32>
    %34 = arith.addf %32, %33 : vector<48x16xf32>
    %c0_15 = arith.constant 0 : index
    %c0_16 = arith.constant 0 : index
    %35 = vector.load %arg5[%c0_15, %c0_16] : memref<16x16xf32, #tpu.memory_space<vmem>>, vector<16x16xf32>
    %cst_17 = arith.constant dense<0.000000e+00> : vector<48x16xf32>
    %36 = tpu.matmul %34, %35, %cst_17 {dimension_numbers = #tpu.dot_dimension_numbers<[1], [0], [0], [1], [0, 0, 1, 1], [], []>} : vector<48x16xf32>, vector<16x16xf32>, vector<48x16xf32> -> vector<48x16xf32>
    %c0_18 = arith.constant 0 : index
    %c0_19 = arith.constant 0 : index
    %37 = vector.load %arg6[%c0_18, %c0_19] : memref<1x16xf32, #tpu.memory_space<vmem>>, vector<1x16xf32>
    %38 = vector.broadcast %37 : vector<1x16xf32> to vector<48x16xf32>
    %39 = arith.addf %36, %38 : vector<48x16xf32>
    %40 = vector.shape_cast %39 : vector<48x16xf32> to vector<6x8x16xf32>
    %41 = arith.truncf %40 : vector<6x8x16xf32> to vector<6x8x16xbf16>
    "tpu.trace_start"() <{level = 10 : i32, message = "bij,bjc->bic"}> : () -> ()
    %cst_20 = arith.constant dense<0.000000e+00> : vector<6x8x16xf32>
    %42 = tpu.matmul %2, %41, %cst_20 {dimension_numbers = #tpu.dot_dimension_numbers<[2], [1], [1], [2], [0, 0, 0, 1, 1, 2], [0], [0]>} : vector<6x8x8xbf16>, vector<6x8x16xbf16>, vector<6x8x16xf32> -> vector<6x8x16xf32>
    "tpu.trace_stop"() : () -> ()
    %43 = vector.broadcast %10 : vector<6x8x1xf32> to vector<6x8x16xf32>
    %44 = arith.mulf %42, %43 : vector<6x8x16xf32>
    %45 = vector.shape_cast %44 : vector<6x8x16xf32> to vector<48x16xf32>
    %46 = tpu.concatenate %45, %39 in 1 : vector<48x16xf32>, vector<48x16xf32> -> vector<48x32xf32>
    %c0_21 = arith.constant 0 : index
    %c0_22 = arith.constant 0 : index
    %47 = vector.load %arg7[%c0_21, %c0_22] : memref<32x128xf32, #tpu.memory_space<vmem>>, vector<32x128xf32>
    %cst_23 = arith.constant dense<0.000000e+00> : vector<48x128xf32>
    %48 = tpu.matmul %46, %47, %cst_23 {dimension_numbers = #tpu.dot_dimension_numbers<[1], [0], [0], [1], [0, 0, 1, 1], [], []>} : vector<48x32xf32>, vector<32x128xf32>, vector<48x128xf32> -> vector<48x128xf32>
    %c0_24 = arith.constant 0 : index
    %c0_25 = arith.constant 0 : index
    %49 = vector.load %arg8[%c0_24, %c0_25] : memref<1x128xf32, #tpu.memory_space<vmem>>, vector<1x128xf32>
    %50 = vector.broadcast %49 : vector<1x128xf32> to vector<48x128xf32>
    %51 = arith.addf %48, %50 : vector<48x128xf32>
    %cst_26 = arith.constant 0.000000e+00 : f32
    %52 = vector.broadcast %cst_26 : f32 to vector<48x128xf32>
    %53 = arith.maximumf %51, %52 : vector<48x128xf32>
    %54 = vector.broadcast %19 : vector<48x1xf32> to vector<48x128xf32>
    %55 = arith.mulf %53, %54 : vector<48x128xf32>
    %56 = vector.broadcast %20 : vector<48x1xf32> to vector<48x128xf32>
    %57 = arith.addf %55, %56 : vector<48x128xf32>
    %58 = arith.addf %57, %27 : vector<48x128xf32>
    %59 = vector.shape_cast %58 : vector<48x128xf32> to vector<6x8x128xf32>
    %60 = arith.truncf %59 : vector<6x8x128xf32> to vector<6x8x128xbf16>
    %c0_27 = arith.constant 0 : index
    %c0_28 = arith.constant 0 : index
    %c0_29 = arith.constant 0 : index
    %61 = vector.load %arg10[%c0_27, %c0_28, %c0_29] : memref<6x8x128xbf16, #tpu.memory_space<vmem>>, vector<6x8x128xbf16>
    tpu.vector_store %arg10[%c0_27, %c0_28, %c0_29], %60 {strides = array<i32>} : memref<6x8x128xbf16, #tpu.memory_space<vmem>>, vector<6x8x128xbf16>,
    return
  }
  func.func @transform_0(%arg0: i32) -> (i32, i32, i32) {
    %c0_i32 = arith.constant 0 : i32
    %c0_i32_0 = arith.constant 0 : i32
    %c0_i32_1 = arith.constant 0 : i32
    return %arg0, %c0_i32, %c0_i32_0 : i32, i32, i32
  }
  func.func @transform_1(%arg0: i32) -> (i32, i32, i32) {
    %c0_i32 = arith.constant 0 : i32
    %c0_i32_0 = arith.constant 0 : i32
    %c0_i32_1 = arith.constant 0 : i32
    return %arg0, %c0_i32, %c0_i32_0 : i32, i32, i32
  }
  func.func @transform_2(%arg0: i32) -> (i32, i32) {
    %c0_i32 = arith.constant 0 : i32
    %c0_i32_0 = arith.constant 0 : i32
    %c0_i32_1 = arith.constant 0 : i32
    return %c0_i32, %c0_i32_0 : i32, i32
  }
  func.func @transform_3(%arg0: i32) -> (i32, i32) {
    %c0_i32 = arith.constant 0 : i32
    %c0_i32_0 = arith.constant 0 : i32
    %c0_i32_1 = arith.constant 0 : i32
    return %c0_i32, %c0_i32_0 : i32, i32
  }
  func.func @transform_4(%arg0: i32) -> (i32, i32) {
    %c0_i32 = arith.constant 0 : i32
    %c0_i32_0 = arith.constant 0 : i32
    %c0_i32_1 = arith.constant 0 : i32
    return %c0_i32, %c0_i32_0 : i32, i32
  }
  func.func @transform_5(%arg0: i32) -> (i32, i32) {
    %c0_i32 = arith.constant 0 : i32
    %c0_i32_0 = arith.constant 0 : i32
    %c0_i32_1 = arith.constant 0 : i32
    return %c0_i32, %c0_i32_0 : i32, i32
  }
  func.func @transform_6(%arg0: i32) -> (i32, i32) {
    %c0_i32 = arith.constant 0 : i32
    %c0_i32_0 = arith.constant 0 : i32
    %c0_i32_1 = arith.constant 0 : i32
    return %c0_i32, %c0_i32_0 : i32, i32
  }
  func.func @transform_7(%arg0: i32) -> (i32, i32) {
    %c0_i32 = arith.constant 0 : i32
    %c0_i32_0 = arith.constant 0 : i32
    %c0_i32_1 = arith.constant 0 : i32
    return %c0_i32, %c0_i32_0 : i32, i32
  }
  func.func @transform_8(%arg0: i32) -> (i32, i32) {
    %c0_i32 = arith.constant 0 : i32
    %c0_i32_0 = arith.constant 0 : i32
    %c0_i32_1 = arith.constant 0 : i32
    return %c0_i32, %c0_i32_0 : i32, i32
  }
  func.func @transform_9(%arg0: i32) -> (i32, i32, i32) {
    %c0_i32 = arith.constant 0 : i32
    %c0_i32_0 = arith.constant 0 : i32
    %c0_i32_1 = arith.constant 0 : i32
    return %arg0, %c0_i32, %c0_i32_0 : i32, i32, i32
  }
}

</mosaic_0001>

<llo_original>
// kernel: tpu_custom_call.1
$region0: #{tpu_custom_call.1}
  #allocation0 [shape = 'u32[]', space=smem, size = 0x4, offset = 0x4, fixed_abs, tag = 'smem constant byte address 0x4 - core index']
  #allocation1 [shape = 'u32[144,128]{1,0:T(1,128)}', space=vmem, size = 0x12000, scoped, tag = 'internal scratch']
  %s0 = inlined_call_operand.vmem [shape: f32[6,8,16], index: 0, kind: input, shape index: {}]
  %s1 = inlined_call_operand.hbm [shape: s8[6,8,8], index: 1, kind: input, shape index: {}]
  %s2 = inlined_call_operand.hbm [shape: f32[32,144], index: 2, kind: input, shape index: {}]
  %s3 = inlined_call_operand.vmem [shape: f32[1,144], index: 3, kind: input, shape index: {}]
  %s4 = inlined_call_operand.hbm [shape: f32[16,16], index: 4, kind: input, shape index: {}]
  %s5 = inlined_call_operand.vmem [shape: f32[1,16], index: 5, kind: input, shape index: {}]
  %s6 = inlined_call_operand.hbm [shape: f32[32,128], index: 6, kind: input, shape index: {}]
  %s7 = inlined_call_operand.vmem [shape: f32[1,128], index: 7, kind: input, shape index: {}]
  %s8 = inlined_call_operand.vmem [shape: f32[48,4], index: 8, kind: input, shape index: {}]
  %s9 = inlined_call_operand.hbm [shape: bf16[6,8,128], index: 9, kind: output, shape index: {}]
  %s10 = sld [smem:[#allocation0]]
  $region62: #{tpu_custom_call.1} parent=0
    _
  %s12 = ssub.s32 1, %s10
  %s13 = scalar_select 0, %s12, %s10
  $region1: #{tpu_custom_call.1} parent=0
    #allocation2 [shape = 'u8[6144]{0}', space=vmem, size = 0x1800, scoped, tag = 'input window, operand 1, single buffered']
    #allocation3 [shape = 's32[1]{0}', space=sflag, size = 0x4, scoped, tag = 'scoped memory for tpu_custom_call.1']
    #allocation4 [shape = 's32[1]{0}', space=sflag, size = 0x4, scoped, tag = 'scoped memory for tpu_custom_call.1']
    #allocation5 [shape = 'u8[32768]{0}', space=vmem, size = 0x8000, scoped, tag = 'input window, operand 2, single buffered']
    #allocation6 [shape = 's32[1]{0}', space=sflag, size = 0x4, scoped, tag = 'scoped memory for tpu_custom_call.1']
    #allocation7 [shape = 'u8[8192]{0}', space=vmem, size = 0x2000, scoped, tag = 'input window, operand 4, single buffered']
    #allocation8 [shape = 'u8[16384]{0}', space=vmem, size = 0x4000, scoped, tag = 'input window, operand 6, single buffered']
    #allocation9 [shape = 's32[1]{0}', space=sflag, size = 0x4, scoped, tag = 'scoped memory for tpu_custom_call.1']
    #allocation10 [shape = 'u8[12288]{0}', space=vmem, size = 0x3000, scoped, tag = 'output window, operand 0, single buffered']
    %14 = vsyncpa [#allocation3], 0
    %15 = vsyncpa [#allocation6], 0
    %16 = vsyncpa [#allocation9], 0
    %17 = vsyncpa [#allocation4], 0
    // Predicated region
    $region2: #{tpu_custom_call.1} parent=1 // pred_check
      _
    $region3: #{tpu_custom_call.1} parent=1 // pred_check_branch
      %19 = sbr.rel (0) target = $region5
    $region4: #{tpu_custom_call.1} parent=1 // pred_region
      _
    $region5: #{tpu_custom_call.1} parent=1 // pred_fallthru
      _
    // Predicated region
    $region6: #{tpu_custom_call.1} parent=1 // pred_check
      _
    $region7: #{tpu_custom_call.1} parent=1 // pred_check_branch
      %21 = sbr.rel (0) target = $region9
    $region8: #{tpu_custom_call.1} parent=1 // pred_region
      %s23 = ssub.s32 192, 192
      %24 = vsyncadd [#allocation3], %s23
      %s25 = sshll.u32 [#allocation2], 4
      %s26 = int_to_ptr.vmem [resolvable:$true] %s25
      %31 = dma.hbm_to_vmem [thread:$0]  %s1, 192, %s26, [#allocation3], 32, 32, 2
    $region9: #{tpu_custom_call.1} parent=1 // pred_fallthru
      _
    // Predicated region
    $region10: #{tpu_custom_call.1} parent=1 // pred_check
      _
    $region11: #{tpu_custom_call.1} parent=1 // pred_check_branch
      %33 = sbr.rel (0) target = $region13
    $region12: #{tpu_custom_call.1} parent=1 // pred_region
      %s35 = ssub.s32 1024, 1024
      %36 = vsyncadd [#allocation6], %s35
      %s37 = sshll.u32 [#allocation5], 4
      %s38 = int_to_ptr.vmem [resolvable:$true] %s37
      %43 = dma.hbm_to_vmem [thread:$0]  %s2, 1024, %s38, [#allocation6], 256, 256, 16
    $region13: #{tpu_custom_call.1} parent=1 // pred_fallthru
      _
    // Predicated region
    $region14: #{tpu_custom_call.1} parent=1 // pred_check
      _
    $region15: #{tpu_custom_call.1} parent=1 // pred_check_branch
      %45 = sbr.rel (0) target = $region17
    $region16: #{tpu_custom_call.1} parent=1 // pred_region
      _
    $region17: #{tpu_custom_call.1} parent=1 // pred_fallthru
      _
    // Predicated region
    $region18: #{tpu_custom_call.1} parent=1 // pred_check
      _
    $region19: #{tpu_custom_call.1} parent=1 // pred_check_branch
      %47 = sbr.rel (0) target = $region21
    $region20: #{tpu_custom_call.1} parent=1 // pred_region
      %s49 = ssub.s32 256, 256
      %50 = vsyncadd [#allocation6], %s49
      %s51 = sshll.u32 [#allocation7], 4
      %s52 = int_to_ptr.vmem [resolvable:$true] %s51
      %57 = dma.hbm_to_vmem [thread:$0]  %s4, 256, %s52, [#allocation6], 128, 128, 8
    $region21: #{tpu_custom_call.1} parent=1 // pred_fallthru
      _
    // Predicated region
    $region22: #{tpu_custom_call.1} parent=1 // pred_check
      _
    $region23: #{tpu_custom_call.1} parent=1 // pred_check_branch
      %59 = sbr.rel (0) target = $region25
    $region24: #{tpu_custom_call.1} parent=1 // pred_region
      _
    $region25: #{tpu_custom_call.1} parent=1 // pred_fallthru
      _
    // Predicated region
    $region26: #{tpu_custom_call.1} parent=1 // pred_check
      _
    $region27: #{tpu_custom_call.1} parent=1 // pred_check_branch
      %61 = sbr.rel (0) target = $region29
    $region28: #{tpu_custom_call.1} parent=1 // pred_region
      %s63 = ssub.s32 512, 512
      %64 = vsyncadd [#allocation9], %s63
      %s65 = sshll.u32 [#allocation8], 4
      %s66 = int_to_ptr.vmem [resolvable:$true] %s65
      %71 = dma.hbm_to_vmem [thread:$0]  %s6, 512, %s66, [#allocation9], 128, 128, 8
    $region29: #{tpu_custom_call.1} parent=1 // pred_fallthru
      _
    // Predicated region
    $region30: #{tpu_custom_call.1} parent=1 // pred_check
      _
    $region31: #{tpu_custom_call.1} parent=1 // pred_check_branch
      %73 = sbr.rel (0) target = $region33
    $region32: #{tpu_custom_call.1} parent=1 // pred_region
      _
    $region33: #{tpu_custom_call.1} parent=1 // pred_fallthru
      _
    // Predicated region
    $region34: #{tpu_custom_call.1} parent=1 // pred_check
      _
    $region35: #{tpu_custom_call.1} parent=1 // pred_check_branch
      %75 = sbr.rel (0) target = $region37
    $region36: #{tpu_custom_call.1} parent=1 // pred_region
      _
    $region37: #{tpu_custom_call.1} parent=1 // pred_fallthru
      _
    // Predicated region
    $region38: #{tpu_custom_call.1} parent=1 // pred_check
      _
    $region39: #{tpu_custom_call.1} parent=1 // pred_check_branch
      %77 = sbr.rel (0) target = $region41
    $region40: #{tpu_custom_call.1} parent=1 // pred_region
      %78 = dma.done [#allocation3], 192
    $region41: #{tpu_custom_call.1} parent=1 // pred_fallthru
      _
    // Predicated region
    $region42: #{tpu_custom_call.1} parent=1 // pred_check
      _
    $region43: #{tpu_custom_call.1} parent=1 // pred_check_branch
      %80 = sbr.rel (0) target = $region45
    $region44: #{tpu_custom_call.1} parent=1 // pred_region
      %81 = dma.done [#allocation6], 1024
    $region45: #{tpu_custom_call.1} parent=1 // pred_fallthru
      _
    // Predicated region
    $region46: #{tpu_custom_call.1} parent=1 // pred_check
      _
    $region47: #{tpu_custom_call.1} parent=1 // pred_check_branch
      %83 = sbr.rel (0) target = $region49
    $region48: #{tpu_custom_call.1} parent=1 // pred_region
      %84 = dma.done [#allocation6], 256
    $region49: #{tpu_custom_call.1} parent=1 // pred_fallthru
      _
    // Predicated region
    $region50: #{tpu_custom_call.1} parent=1 // pred_check
      _
    $region51: #{tpu_custom_call.1} parent=1 // pred_check_branch
      %86 = sbr.rel (0) target = $region53
    $region52: #{tpu_custom_call.1} parent=1 // pred_region
      %87 = dma.done [#allocation9], 512
    $region53: #{tpu_custom_call.1} parent=1 // pred_fallthru
      _
    %v90 = vld [vmem:[%s0] sm:$0xff]
    %v91 = vld [vmem:[%s0 + $0x8] sm:$0xff]
    %v92 = vld [vmem:[%s0 + $0x10] sm:$0xff]
    %v93 = vld [vmem:[%s0 + $0x18] sm:$0xff]
    %v94 = vld [vmem:[%s0 + $0x20] sm:$0xff]
    %v95 = vld [vmem:[%s0 + $0x28] sm:$0xff]
    %v96 = vld [vmem:[#allocation2] sm:$0x3]
    %v97 = vld [vmem:[#allocation2 + $0x2] sm:$0x3]
    %v98 = vld [vmem:[#allocation2 + $0x4] sm:$0x3]
    %v99 = vld [vmem:[#allocation2 + $0x6] sm:$0x3]
    %v100 = vld [vmem:[#allocation2 + $0x8] sm:$0x3]
    %v101 = vld [vmem:[#allocation2 + $0xa] sm:$0x3]
    %v102 = vunpack.c.l.s8.bf16 %v96
    %v103 = vunpack.c.l.s8.bf16 %v97
    %v104 = vunpack.c.l.s8.bf16 %v98
    %v105 = vunpack.c.l.s8.bf16 %v99
    %v106 = vunpack.c.l.s8.bf16 %v100
    %v107 = vunpack.c.l.s8.bf16 %v101
    %v108 = vpack.c.bf16 %v90, %v90
    %v109 = vpack.c.bf16 %v91, %v91
    %v110 = vpack.c.bf16 %v92, %v92
    %v111 = vpack.c.bf16 %v93, %v93
    %v112 = vpack.c.bf16 %v94, %v94
    %v113 = vpack.c.bf16 %v95, %v95
    %vm114 = vcmask 130048
    %v117 = vsel %vm114, %v108, 1065369472
    %v119 = vsel %vm114, %v109, 1065369472
    %v121 = vsel %vm114, %v110, 1065369472
    %v123 = vsel %vm114, %v111, 1065369472
    %v125 = vsel %vm114, %v112, 1065369472
    %v127 = vsel %vm114, %v113, 1065369472
    %vm128 = vcmask 64512
    %v130 = vsel %vm128, %v102, 0
    %vm132 = vcmask 1043456
    %v133 = vsel %vm132, %v117, 0
    %135 = vmatprep.subr.bf16.mxu0 0
    %136 = vmatpush1.bf16.msra.mxu0 0
    %137 = vmatprep.subr.bf16.mxu0 0
    %138 = vmatpush1.bf16.msra.mxu0 0
    %139 = vmatprep.subr.bf16.mxu0 0
    %140 = vmatpush1.bf16.msra.mxu0 0
    %141 = vmatprep.subr.bf16.mxu0 0
    %142 = vmatpush1.bf16.msra.mxu0 0
    %143 = vmatprep.subr.bf16.mxu0 0
    %144 = vmatpush1.bf16.msra.mxu0 0
    %145 = vmatprep.subr.bf16.mxu0 0
    %146 = vmatpush1.bf16.msra.mxu0 0
    %147 = vmatprep.subr.bf16.mxu0 0
    %148 = vmatpush1.bf16.msra.mxu0 0
    %149 = vmatprep.subr.bf16.mxu0 0
    %150 = vmatpush1.bf16.msra.mxu0 %v133
    %151 = vmatprep.subr.bf16.mxu0 0
    %152 = vmatpush2.bf16.msra.mxu0 0
    %153 = vmatprep.subr.bf16.mxu0 0
    %154 = vmatpush2.bf16.msra.mxu0 0
    %155 = vmatprep.subr.bf16.mxu0 0
    %156 = vmatpush2.bf16.msra.mxu0 0
    %157 = vmatprep.subr.bf16.mxu0 0
    %158 = vmatpush2.bf16.msra.mxu0 0
    %159 = vmatprep.subr.bf16.mxu0 0
    %160 = vmatpush2.bf16.msra.mxu0 0
    %161 = vmatprep.subr.bf16.mxu0 0
    %162 = vmatpush2.bf16.msra.mxu0 0
    %163 = vmatprep.subr.bf16.mxu0 0
    %164 = vmatpush2.bf16.msra.mxu0 0
    %165 = vmatprep.subr.bf16.mxu0 0
    %166 = vmatpush2.bf16.msra.mxu0 0
    %167 = vmatprep.mubr.bf16.mxu0 0
    %168 = vmatmul.mubr.bf16.gmra.mxu0 %v130
    %v169 = vpop.f32.mrf.mxu0
    %v170 = vadd.f32 0.0, %v169
    %v171 = vpop.f32.mrf.mxu0
    %v172 = vpop.f32.mrf.mxu0
    %v173 = vpop.f32.mrf.mxu0
    %174 = vdwg.mxu0
    %v176 = vsel %vm128, %v103, 0
    %v178 = vsel %vm132, %v119, 0
    %180 = vmatprep.subr.bf16.mxu0 0
    %181 = vmatpush1.bf16.msra.mxu0 0
    %182 = vmatprep.subr.bf16.mxu0 0
    %183 = vmatpush1.bf16.msra.mxu0 0
    %184 = vmatprep.subr.bf16.mxu0 0
    %185 = vmatpush1.bf16.msra.mxu0 0
    %186 = vmatprep.subr.bf16.mxu0 0
    %187 = vmatpush1.bf16.msra.mxu0 0
    %188 = vmatprep.subr.bf16.mxu0 0
    %189 = vmatpush1.bf16.msra.mxu0 0
    %190 = vmatprep.subr.bf16.mxu0 0
    %191 = vmatpush1.bf16.msra.mxu0 0
    %192 = vmatprep.subr.bf16.mxu0 0
    %193 = vmatpush1.bf16.msra.mxu0 0
    %194 = vmatprep.subr.bf16.mxu0 0
    %195 = vmatpush1.bf16.msra.mxu0 %v178
    %196 = vmatprep.subr.bf16.mxu0 0
    %197 = vmatpush2.bf16.msra.mxu0 0
    %198 = vmatprep.subr.bf16.mxu0 0
    %199 = vmatpush2.bf16.msra.mxu0 0
    %200 = vmatprep.subr.bf16.mxu0 0
    %201 = vmatpush2.bf16.msra.mxu0 0
    %202 = vmatprep.subr.bf16.mxu0 0
    %203 = vmatpush2.bf16.msra.mxu0 0
    %204 = vmatprep.subr.bf16.mxu0 0
    %205 = vmatpush2.bf16.msra.mxu0 0
    %206 = vmatprep.subr.bf16.mxu0 0
    %207 = vmatpush2.bf16.msra.mxu0 0
    %208 = vmatprep.subr.bf16.mxu0 0
    %209 = vmatpush2.bf16.msra.mxu0 0
    %210 = vmatprep.subr.bf16.mxu0 0
    %211 = vmatpush2.bf16.msra.mxu0 0
    %212 = vmatprep.mubr.bf16.mxu0 0
    %213 = vmatmul.mubr.bf16.gmra.mxu0 %v176
    %v214 = vpop.f32.mrf.mxu0
    %v215 = vadd.f32 0.0, %v214
    %v216 = vpop.f32.mrf.mxu0
    %v217 = vpop.f32.mrf.mxu0
    %v218 = vpop.f32.mrf.mxu0
    %219 = vdwg.mxu0
    %v221 = vsel %vm128, %v104, 0
    %v223 = vsel %vm132, %v121, 0
    %225 = vmatprep.subr.bf16.mxu0 0
    %226 = vmatpush1.bf16.msra.mxu0 0
    %227 = vmatprep.subr.bf16.mxu0 0
    %228 = vmatpush1.bf16.msra.mxu0 0
    %229 = vmatprep.subr.bf16.mxu0 0
    %230 = vmatpush1.bf16.msra.mxu0 0
    %231 = vmatprep.subr.bf16.mxu0 0
    %232 = vmatpush1.bf16.msra.mxu0 0
    %233 = vmatprep.subr.bf16.mxu0 0
    %234 = vmatpush1.bf16.msra.mxu0 0
    %235 = vmatprep.subr.bf16.mxu0 0
    %236 = vmatpush1.bf16.msra.mxu0 0
    %237 = vmatprep.subr.bf16.mxu0 0
    %238 = vmatpush1.bf16.msra.mxu0 0
    %239 = vmatprep.subr.bf16.mxu0 0
    %240 = vmatpush1.bf16.msra.mxu0 %v223
    %241 = vmatprep.subr.bf16.mxu0 0
    %242 = vmatpush2.bf16.msra.mxu0 0
    %243 = vmatprep.subr.bf16.mxu0 0
    %244 = vmatpush2.bf16.msra.mxu0 0
    %245 = vmatprep.subr.bf16.mxu0 0
    %246 = vmatpush2.bf16.msra.mxu0 0
    %247 = vmatprep.subr.bf16.mxu0 0
    %248 = vmatpush2.bf16.msra.mxu0 0
    %249 = vmatprep.subr.bf16.mxu0 0
    %250 = vmatpush2.bf16.msra.mxu0 0
    %251 = vmatprep.subr.bf16.mxu0 0
    %252 = vmatpush2.bf16.msra.mxu0 0
    %253 = vmatprep.subr.bf16.mxu0 0
    %254 = vmatpush2.bf16.msra.mxu0 0
    %255 = vmatprep.subr.bf16.mxu0 0
    %256 = vmatpush2.bf16.msra.mxu0 0
    %257 = vmatprep.mubr.bf16.mxu0 0
    %258 = vmatmul.mubr.bf16.gmra.mxu0 %v221
    %v259 = vpop.f32.mrf.mxu0
    %v260 = vadd.f32 0.0, %v259
    %v261 = vpop.f32.mrf.mxu0
    %v262 = vpop.f32.mrf.mxu0
    %v263 = vpop.f32.mrf.mxu0
    %264 = vdwg.mxu0
    %v266 = vsel %vm128, %v105, 0
    %v268 = vsel %vm132, %v123, 0
    %270 = vmatprep.subr.bf16.mxu0 0
    %271 = vmatpush1.bf16.msra.mxu0 0
    %272 = vmatprep.subr.bf16.mxu0 0
    %273 = vmatpush1.bf16.msra.mxu0 0
    %274 = vmatprep.subr.bf16.mxu0 0
    %275 = vmatpush1.bf16.msra.mxu0 0
    %276 = vmatprep.subr.bf16.mxu0 0
    %277 = vmatpush1.bf16.msra.mxu0 0
    %278 = vmatprep.subr.bf16.mxu0 0
    %279 = vmatpush1.bf16.msra.mxu0 0
    %280 = vmatprep.subr.bf16.mxu0 0
    %281 = vmatpush1.bf16.msra.mxu0 0
    %282 = vmatprep.subr.bf16.mxu0 0
    %283 = vmatpush1.bf16.msra.mxu0 0
    %284 = vmatprep.subr.bf16.mxu0 0
    %285 = vmatpush1.bf16.msra.mxu0 %v268
    %286 = vmatprep.subr.bf16.mxu0 0
    %287 = vmatpush2.bf16.msra.mxu0 0
    %288 = vmatprep.subr.bf16.mxu0 0
    %289 = vmatpush2.bf16.msra.mxu0 0
    %290 = vmatprep.subr.bf16.mxu0 0
    %291 = vmatpush2.bf16.msra.mxu0 0
    %292 = vmatprep.subr.bf16.mxu0 0
    %293 = vmatpush2.bf16.msra.mxu0 0
    %294 = vmatprep.subr.bf16.mxu0 0
    %295 = vmatpush2.bf16.msra.mxu0 0
    %296 = vmatprep.subr.bf16.mxu0 0
    %297 = vmatpush2.bf16.msra.mxu0 0
    %298 = vmatprep.subr.bf16.mxu0 0
    %299 = vmatpush2.bf16.msra.mxu0 0
    %300 = vmatprep.subr.bf16.mxu0 0
    %301 = vmatpush2.bf16.msra.mxu0 0
    %302 = vmatprep.mubr.bf16.mxu0 0
    %303 = vmatmul.mubr.bf16.gmra.mxu0 %v266
    %v304 = vpop.f32.mrf.mxu0
    %v305 = vadd.f32 0.0, %v304
    %v306 = vpop.f32.mrf.mxu0
    %v307 = vpop.f32.mrf.mxu0
    %v308 = vpop.f32.mrf.mxu0
    %309 = vdwg.mxu0
    %v311 = vsel %vm128, %v106, 0
    %v313 = vsel %vm132, %v125, 0
    %315 = vmatprep.subr.bf16.mxu0 0
    %316 = vmatpush1.bf16.msra.mxu0 0
    %317 = vmatprep.subr.bf16.mxu0 0
    %318 = vmatpush1.bf16.msra.mxu0 0
    %319 = vmatprep.subr.bf16.mxu0 0
    %320 = vmatpush1.bf16.msra.mxu0 0
    %321 = vmatprep.subr.bf16.mxu0 0
    %322 = vmatpush1.bf16.msra.mxu0 0
    %323 = vmatprep.subr.bf16.mxu0 0
    %324 = vmatpush1.bf16.msra.mxu0 0
    %325 = vmatprep.subr.bf16.mxu0 0
    %326 = vmatpush1.bf16.msra.mxu0 0
    %327 = vmatprep.subr.bf16.mxu0 0
    %328 = vmatpush1.bf16.msra.mxu0 0
    %329 = vmatprep.subr.bf16.mxu0 0
    %330 = vmatpush1.bf16.msra.mxu0 %v313
    %331 = vmatprep.subr.bf16.mxu0 0
    %332 = vmatpush2.bf16.msra.mxu0 0
    %333 = vmatprep.subr.bf16.mxu0 0
    %334 = vmatpush2.bf16.msra.mxu0 0
    %335 = vmatprep.subr.bf16.mxu0 0
    %336 = vmatpush2.bf16.msra.mxu0 0
    %337 = vmatprep.subr.bf16.mxu0 0
    %338 = vmatpush2.bf16.msra.mxu0 0
    %339 = vmatprep.subr.bf16.mxu0 0
    %340 = vmatpush2.bf16.msra.mxu0 0
    %341 = vmatprep.subr.bf16.mxu0 0
    %342 = vmatpush2.bf16.msra.mxu0 0
    %343 = vmatprep.subr.bf16.mxu0 0
    %344 = vmatpush2.bf16.msra.mxu0 0
    %345 = vmatprep.subr.bf16.mxu0 0
    %346 = vmatpush2.bf16.msra.mxu0 0
    %347 = vmatprep.mubr.bf16.mxu0 0
    %348 = vmatmul.mubr.bf16.gmra.mxu0 %v311
    %v349 = vpop.f32.mrf.mxu0
    %v350 = vadd.f32 0.0, %v349
    %v351 = vpop.f32.mrf.mxu0
    %v352 = vpop.f32.mrf.mxu0
    %v353 = vpop.f32.mrf.mxu0
    %354 = vdwg.mxu0
    %v356 = vsel %vm128, %v107, 0
    %v358 = vsel %vm132, %v127, 0
    %360 = vmatprep.subr.bf16.mxu0 0
    %361 = vmatpush1.bf16.msra.mxu0 0
    %362 = vmatprep.subr.bf16.mxu0 0
    %363 = vmatpush1.bf16.msra.mxu0 0
    %364 = vmatprep.subr.bf16.mxu0 0
    %365 = vmatpush1.bf16.msra.mxu0 0
    %366 = vmatprep.subr.bf16.mxu0 0
    %367 = vmatpush1.bf16.msra.mxu0 0
    %368 = vmatprep.subr.bf16.mxu0 0
    %369 = vmatpush1.bf16.msra.mxu0 0
    %370 = vmatprep.subr.bf16.mxu0 0
    %371 = vmatpush1.bf16.msra.mxu0 0
    %372 = vmatprep.subr.bf16.mxu0 0
    %373 = vmatpush1.bf16.msra.mxu0 0
    %374 = vmatprep.subr.bf16.mxu0 0
    %375 = vmatpush1.bf16.msra.mxu0 %v358
    %376 = vmatprep.subr.bf16.mxu0 0
    %377 = vmatpush2.bf16.msra.mxu0 0
    %378 = vmatprep.subr.bf16.mxu0 0
    %379 = vmatpush2.bf16.msra.mxu0 0
    %380 = vmatprep.subr.bf16.mxu0 0
    %381 = vmatpush2.bf16.msra.mxu0 0
    %382 = vmatprep.subr.bf16.mxu0 0
    %383 = vmatpush2.bf16.msra.mxu0 0
    %384 = vmatprep.subr.bf16.mxu0 0
    %385 = vmatpush2.bf16.msra.mxu0 0
    %386 = vmatprep.subr.bf16.mxu0 0
    %387 = vmatpush2.bf16.msra.mxu0 0
    %388 = vmatprep.subr.bf16.mxu0 0
    %389 = vmatpush2.bf16.msra.mxu0 0
    %390 = vmatprep.subr.bf16.mxu0 0
    %391 = vmatpush2.bf16.msra.mxu0 0
    %392 = vmatprep.mubr.bf16.mxu0 0
    %393 = vmatmul.mubr.bf16.gmra.mxu0 %v356
    %v394 = vpop.f32.mrf.mxu0
    %v395 = vadd.f32 0.0, %v394
    %v396 = vpop.f32.mrf.mxu0
    %v397 = vpop.f32.mrf.mxu0
    %v398 = vpop.f32.mrf.mxu0
    %399 = vdwg.mxu0
    %v400 = vmax.f32 %v170, 1.0
    %v401 = vmax.f32 %v215, 1.0
    %v402 = vmax.f32 %v260, 1.0
    %v403 = vmax.f32 %v305, 1.0
    %v404 = vmax.f32 %v350, 1.0
    %v405 = vmax.f32 %v395, 1.0
    %v406 = vrcp.pop %v400
    %v407 = vrcp.pop %v401
    %v408 = vrcp.pop %v402
    %v409 = vrcp.pop %v403
    %v410 = vrcp.pop %v404
    %v411 = vrcp.pop %v405
    %413 = vset.pattern.permute.xlu0 16
    %414 = vperm.xlu0 %413, %v406
    %v415 = vpop.permute.xlu0 %414
    %418 = vset.pattern.permute.xlu0 16
    %419 = vperm.xlu0 %418, %v407
    %v420 = vpop.permute.xlu0 %419
    %423 = vset.pattern.permute.xlu0 16
    %424 = vperm.xlu0 %423, %v408
    %v425 = vpop.permute.xlu0 %424
    %428 = vset.pattern.permute.xlu0 16
    %429 = vperm.xlu0 %428, %v409
    %v430 = vpop.permute.xlu0 %429
    %433 = vset.pattern.permute.xlu0 16
    %434 = vperm.xlu0 %433, %v410
    %v435 = vpop.permute.xlu0 %434
    %438 = vset.pattern.permute.xlu0 16
    %439 = vperm.xlu0 %438, %v411
    %v440 = vpop.permute.xlu0 %439
    %v442 = vmul.f32 %v170, %v415
    %v443 = vmul.f32 %v215, %v420
    %v444 = vmul.f32 %v260, %v425
    %v445 = vmul.f32 %v305, %v430
    %v446 = vmul.f32 %v350, %v435
    %v447 = vmul.f32 %v395, %v440
    %v448 = vld [vmem:[%s8] sm:$0xff]
    %v449 = vld [vmem:[%s8 + $0x8] sm:$0xff]
    %v450 = vld [vmem:[%s8 + $0x10] sm:$0xff]
    %v451 = vld [vmem:[%s8 + $0x18] sm:$0xff]
    %v452 = vld [vmem:[%s8 + $0x20] sm:$0xff]
    %v453 = vld [vmem:[%s8 + $0x28] sm:$0xff]
    %460 = vrot.lane.b32.xlu0 %v90, 16
    %v461 = vpop.permute.xlu0 %460
    %462 = vrot.lane.b32.xlu0 %v91, 16
    %v463 = vpop.permute.xlu0 %462
    %464 = vrot.lane.b32.xlu0 %v92, 16
    %v465 = vpop.permute.xlu0 %464
    %466 = vrot.lane.b32.xlu0 %v93, 16
    %v467 = vpop.permute.xlu0 %466
    %468 = vrot.lane.b32.xlu0 %v94, 16
    %v469 = vpop.permute.xlu0 %468
    %470 = vrot.lane.b32.xlu0 %v95, 16
    %v471 = vpop.permute.xlu0 %470
    %v478 = vsel %vm114, %v442, %v461
    %v479 = vsel %vm114, %v443, %v463
    %v480 = vsel %vm114, %v444, %v465
    %v481 = vsel %vm114, %v445, %v467
    %v482 = vsel %vm114, %v446, %v469
    %v483 = vsel %vm114, %v447, %v471
    %v484 = vld [vmem:[#allocation5] sm:$0xff]
    %v485 = vld [vmem:[#allocation5 + $0x8] sm:$0xff]
    %v486 = vld [vmem:[#allocation5 + $0x10] sm:$0xff]
    %v487 = vld [vmem:[#allocation5 + $0x18] sm:$0xff]
    %v488 = vld [vmem:[#allocation5 + $0x20] sm:$0xff]
    %v489 = vld [vmem:[#allocation5 + $0x28] sm:$0xff]
    %v490 = vld [vmem:[#allocation5 + $0x30] sm:$0xff]
    %v491 = vld [vmem:[#allocation5 + $0x38] sm:$0xff]
    %v492 = vld [vmem:[%s3] sm:$0x3]
    %v494 = vlaneseq
    %v495 = vshrl.u32 %v494, 7
    %v496 = vsub.s32 0, %v495
    %v497 = vrot.slane %v492, %v496
    %v498 = vlaneseq
    %v499 = vshrl.u32 %v498, 7
    %v500 = vsub.s32 1, %v499
    %v501 = vrot.slane %v492, %v500
    %vm504 = vcmask 261120
    %v506 = vsel %vm504, %v478, 0
    %v509 = vsel %vm504, %v479, 0
    %v512 = vsel %vm504, %v480, 0
    %v515 = vsel %vm504, %v481, 0
    %v518 = vsel %vm504, %v482, 0
    %v521 = vsel %vm504, %v483, 0
    %523 = vmatprep.subr.mxu0 0.0
    %524 = vmatpush1.msra.mxu0 0.0
    %525 = vmatprep.subr.mxu0 0.0
    %526 = vmatpush1.msra.mxu0 0.0
    %527 = vmatprep.subr.mxu0 0.0
    %528 = vmatpush1.msra.mxu0 0.0
    %529 = vmatprep.subr.mxu0 0.0
    %530 = vmatpush1.msra.mxu0 0.0
    %531 = vmatprep.subr.mxu0 0.0
    %532 = vmatpush1.msra.mxu0 0.0
    %533 = vmatprep.subr.mxu0 0.0
    %534 = vmatpush1.msra.mxu0 0.0
    %535 = vmatprep.subr.mxu0 0.0
    %536 = vmatpush1.msra.mxu0 0.0
    %537 = vmatprep.subr.mxu0 0.0
    %538 = vmatpush1.msra.mxu0 0.0
    %539 = vmatprep.subr.mxu0 0.0
    %540 = vmatpush1.msra.mxu0 0.0
    %541 = vmatprep.subr.mxu0 0.0
    %542 = vmatpush1.msra.mxu0 0.0
    %543 = vmatprep.subr.mxu0 0.0
    %544 = vmatpush1.msra.mxu0 0.0
    %545 = vmatprep.subr.mxu0 0.0
    %546 = vmatpush1.msra.mxu0 0.0
    %547 = vmatprep.subr.mxu0 %v491
    %548 = vmatpush1.msra.mxu0 %v490
    %549 = vmatprep.subr.mxu0 %v489
    %550 = vmatpush1.msra.mxu0 %v488
    %551 = vmatprep.subr.mxu0 %v487
    %552 = vmatpush1.msra.mxu0 %v486
    %553 = vmatprep.subr.mxu0 %v485
    %554 = vmatpush1.msra.mxu0 %v484
    %555 = vmatprep.subr.mxu0 0.0
    %556 = vmatpush2.msra.mxu0 0.0
    %557 = vmatprep.subr.mxu0 0.0
    %558 = vmatpush2.msra.mxu0 0.0
    %559 = vmatprep.subr.mxu0 0.0
    %560 = vmatpush2.msra.mxu0 0.0
    %561 = vmatprep.subr.mxu0 0.0
    %562 = vmatpush2.msra.mxu0 0.0
    %563 = vmatprep.subr.mxu0 0.0
    %564 = vmatpush2.msra.mxu0 0.0
    %565 = vmatprep.subr.mxu0 0.0
    %566 = vmatpush2.msra.mxu0 0.0
    %567 = vmatprep.subr.mxu0 0.0
    %568 = vmatpush2.msra.mxu0 0.0
    %569 = vmatprep.subr.mxu0 0.0
    %570 = vmatpush2.msra.mxu0 0.0
    %571 = vmatprep.subr.mxu0 0.0
    %572 = vmatpush2.msra.mxu0 0.0
    %573 = vmatprep.subr.mxu0 0.0
    %574 = vmatpush2.msra.mxu0 0.0
    %575 = vmatprep.subr.mxu0 0.0
    %576 = vmatpush2.msra.mxu0 0.0
    %577 = vmatprep.subr.mxu0 0.0
    %578 = vmatpush2.msra.mxu0 0.0
    %579 = vmatprep.subr.mxu0 0.0
    %580 = vmatpush2.msra.mxu0 0.0
    %581 = vmatprep.subr.mxu0 0.0
    %582 = vmatpush2.msra.mxu0 0.0
    %583 = vmatprep.subr.mxu0 0.0
    %584 = vmatpush2.msra.mxu0 0.0
    %585 = vmatprep.subr.mxu0 0.0
    %586 = vmatpush2.msra.mxu0 0.0
    %587 = vmatprep.mubr.f32.mxu0 0.0
    %588 = vmatmul.mubr.f32.gmra.mxu0 %v506
    %v589 = vpop.f32.mrf.mxu0
    %v590 = vadd.f32 %v497, %v589
    %v591 = vpop.f32.mrf.mxu0
    %v592 = vadd.f32 %v501, %v591
    %593 = vmatprep.mubr.f32.mxu0 0.0
    %594 = vmatmul.mubr.f32.gmra.mxu0 %v509
    %v595 = vpop.f32.mrf.mxu0
    %v596 = vadd.f32 %v497, %v595
    %v597 = vpop.f32.mrf.mxu0
    %v598 = vadd.f32 %v501, %v597
    %599 = vmatprep.mubr.f32.mxu0 0.0
    %600 = vmatmul.mubr.f32.gmra.mxu0 %v512
    %v601 = vpop.f32.mrf.mxu0
    %v602 = vadd.f32 %v497, %v601
    %v603 = vpop.f32.mrf.mxu0
    %v604 = vadd.f32 %v501, %v603
    %605 = vmatprep.mubr.f32.mxu0 0.0
    %606 = vmatmul.mubr.f32.gmra.mxu0 %v515
    %v607 = vpop.f32.mrf.mxu0
    %v608 = vadd.f32 %v497, %v607
    %v609 = vpop.f32.mrf.mxu0
    %v610 = vadd.f32 %v501, %v609
    %611 = vmatprep.mubr.f32.mxu0 0.0
    %612 = vmatmul.mubr.f32.gmra.mxu0 %v518
    %v613 = vpop.f32.mrf.mxu0
    %v614 = vadd.f32 %v497, %v613
    %v615 = vpop.f32.mrf.mxu0
    %v616 = vadd.f32 %v501, %v615
    %617 = vmatprep.mubr.f32.mxu0 0.0
    %618 = vmatmul.mubr.f32.gmra.mxu0 %v521
    %v619 = vpop.f32.mrf.mxu0
    %v620 = vadd.f32 %v497, %v619
    %v621 = vpop.f32.mrf.mxu0
    %v622 = vadd.f32 %v501, %v621
    %623 = vdwg.mxu0
    %v624 = vmax.f32 %v592, 0.0
    %v625 = vmax.f32 %v598, 0.0
    %v626 = vmax.f32 %v604, 0.0
    %v627 = vmax.f32 %v610, 0.0
    %v628 = vmax.f32 %v616, 0.0
    %v629 = vmax.f32 %v622, 0.0
    %631 = vset.pattern.permute.xlu0 0
    %632 = vperm.xlu0 %631, %v448
    %v633 = vpop.permute.xlu0 %632
    %636 = vset.pattern.permute.xlu0 0
    %637 = vperm.xlu0 %636, %v449
    %v638 = vpop.permute.xlu0 %637
    %641 = vset.pattern.permute.xlu0 0
    %642 = vperm.xlu0 %641, %v450
    %v643 = vpop.permute.xlu0 %642
    %646 = vset.pattern.permute.xlu0 0
    %647 = vperm.xlu0 %646, %v451
    %v648 = vpop.permute.xlu0 %647
    %651 = vset.pattern.permute.xlu0 0
    %652 = vperm.xlu0 %651, %v452
    %v653 = vpop.permute.xlu0 %652
    %656 = vset.pattern.permute.xlu0 0
    %657 = vperm.xlu0 %656, %v453
    %v658 = vpop.permute.xlu0 %657
    %v660 = vmul.f32 %v624, %v633
    %v661 = vmul.f32 %v625, %v638
    %v662 = vmul.f32 %v626, %v643
    %v663 = vmul.f32 %v627, %v648
    %v664 = vmul.f32 %v628, %v653
    %v665 = vmul.f32 %v629, %v658
    %666 = vset.pattern.permute.xlu0 1
    %667 = vperm.xlu0 %666, %v448
    %v668 = vpop.permute.xlu0 %667
    %670 = vset.pattern.permute.xlu0 1
    %671 = vperm.xlu0 %670, %v449
    %v672 = vpop.permute.xlu0 %671
    %674 = vset.pattern.permute.xlu0 1
    %675 = vperm.xlu0 %674, %v450
    %v676 = vpop.permute.xlu0 %675
    %678 = vset.pattern.permute.xlu0 1
    %679 = vperm.xlu0 %678, %v451
    %v680 = vpop.permute.xlu0 %679
    %682 = vset.pattern.permute.xlu0 1
    %683 = vperm.xlu0 %682, %v452
    %v684 = vpop.permute.xlu0 %683
    %686 = vset.pattern.permute.xlu0 1
    %687 = vperm.xlu0 %686, %v453
    %v688 = vpop.permute.xlu0 %687
    %v690 = vadd.f32 %v660, %v668
    %v691 = vadd.f32 %v661, %v672
    %v692 = vadd.f32 %v662, %v676
    %v693 = vadd.f32 %v663, %v680
    %v694 = vadd.f32 %v664, %v684
    %v695 = vadd.f32 %v665, %v688
    %v696 = vld [vmem:[#allocation7] sm:$0xff]
    %v697 = vld [vmem:[#allocation7 + $0x8] sm:$0xff]
    %v698 = vld [vmem:[%s5] sm:$0x1]
    %v700 = vlaneseq
    %v701 = vshrl.u32 %v700, 7
    %v702 = vsub.s32 0, %v701
    %v703 = vrot.slane %v698, %v702
    %v706 = vsel %vm114, %v690, 0
    %v709 = vsel %vm114, %v691, 0
    %v712 = vsel %vm114, %v692, 0
    %v715 = vsel %vm114, %v693, 0
    %v718 = vsel %vm114, %v694, 0
    %v721 = vsel %vm114, %v695, 0
    %723 = vmatprep.subr.mxu0 0.0
    %724 = vmatpush1.msra.mxu0 0.0
    %725 = vmatprep.subr.mxu0 0.0
    %726 = vmatpush1.msra.mxu0 0.0
    %727 = vmatprep.subr.mxu0 0.0
    %728 = vmatpush1.msra.mxu0 0.0
    %729 = vmatprep.subr.mxu0 0.0
    %730 = vmatpush1.msra.mxu0 0.0
    %731 = vmatprep.subr.mxu0 0.0
    %732 = vmatpush1.msra.mxu0 0.0
    %733 = vmatprep.subr.mxu0 0.0
    %734 = vmatpush1.msra.mxu0 0.0
    %735 = vmatprep.subr.mxu0 0.0
    %736 = vmatpush1.msra.mxu0 0.0
    %737 = vmatprep.subr.mxu0 0.0
    %738 = vmatpush1.msra.mxu0 0.0
    %739 = vmatprep.subr.mxu0 0.0
    %740 = vmatpush1.msra.mxu0 0.0
    %741 = vmatprep.subr.mxu0 0.0
    %742 = vmatpush1.msra.mxu0 0.0
    %743 = vmatprep.subr.mxu0 0.0
    %744 = vmatpush1.msra.mxu0 0.0
    %745 = vmatprep.subr.mxu0 0.0
    %746 = vmatpush1.msra.mxu0 0.0
    %747 = vmatprep.subr.mxu0 0.0
    %748 = vmatpush1.msra.mxu0 0.0
    %749 = vmatprep.subr.mxu0 0.0
    %750 = vmatpush1.msra.mxu0 0.0
    %751 = vmatprep.subr.mxu0 0.0
    %752 = vmatpush1.msra.mxu0 %v697
    %753 = vmatprep.subr.mxu0 0.0
    %754 = vmatpush1.msra.mxu0 %v696
    %755 = vmatprep.subr.mxu0 0.0
    %756 = vmatpush2.msra.mxu0 0.0
    %757 = vmatprep.subr.mxu0 0.0
    %758 = vmatpush2.msra.mxu0 0.0
    %759 = vmatprep.subr.mxu0 0.0
    %760 = vmatpush2.msra.mxu0 0.0
    %761 = vmatprep.subr.mxu0 0.0
    %762 = vmatpush2.msra.mxu0 0.0
    %763 = vmatprep.subr.mxu0 0.0
    %764 = vmatpush2.msra.mxu0 0.0
    %765 = vmatprep.subr.mxu0 0.0
    %766 = vmatpush2.msra.mxu0 0.0
    %767 = vmatprep.subr.mxu0 0.0
    %768 = vmatpush2.msra.mxu0 0.0
    %769 = vmatprep.subr.mxu0 0.0
    %770 = vmatpush2.msra.mxu0 0.0
    %771 = vmatprep.subr.mxu0 0.0
    %772 = vmatpush2.msra.mxu0 0.0
    %773 = vmatprep.subr.mxu0 0.0
    %774 = vmatpush2.msra.mxu0 0.0
    %775 = vmatprep.subr.mxu0 0.0
    %776 = vmatpush2.msra.mxu0 0.0
    %777 = vmatprep.subr.mxu0 0.0
    %778 = vmatpush2.msra.mxu0 0.0
    %779 = vmatprep.subr.mxu0 0.0
    %780 = vmatpush2.msra.mxu0 0.0
    %781 = vmatprep.subr.mxu0 0.0
    %782 = vmatpush2.msra.mxu0 0.0
    %783 = vmatprep.subr.mxu0 0.0
    %784 = vmatpush2.msra.mxu0 0.0
    %785 = vmatprep.subr.mxu0 0.0
    %786 = vmatpush2.msra.mxu0 0.0
    %787 = vmatprep.mubr.f32.mxu0 0.0
    %788 = vmatmul.mubr.f32.gmra.mxu0 %v706
    %v789 = vpop.f32.mrf.mxu0
    %v790 = vadd.f32 %v703, %v789
    %v791 = vpop.f32.mrf.mxu0
    %792 = vmatprep.mubr.f32.mxu0 0.0
    %793 = vmatmul.mubr.f32.gmra.mxu0 %v709
    %v794 = vpop.f32.mrf.mxu0
    %v795 = vadd.f32 %v703, %v794
    %v796 = vpop.f32.mrf.mxu0
    %797 = vmatprep.mubr.f32.mxu0 0.0
    %798 = vmatmul.mubr.f32.gmra.mxu0 %v712
    %v799 = vpop.f32.mrf.mxu0
    %v800 = vadd.f32 %v703, %v799
    %v801 = vpop.f32.mrf.mxu0
    %802 = vmatprep.mubr.f32.mxu0 0.0
    %803 = vmatmul.mubr.f32.gmra.mxu0 %v715
    %v804 = vpop.f32.mrf.mxu0
    %v805 = vadd.f32 %v703, %v804
    %v806 = vpop.f32.mrf.mxu0
    %807 = vmatprep.mubr.f32.mxu0 0.0
    %808 = vmatmul.mubr.f32.gmra.mxu0 %v718
    %v809 = vpop.f32.mrf.mxu0
    %v810 = vadd.f32 %v703, %v809
    %v811 = vpop.f32.mrf.mxu0
    %812 = vmatprep.mubr.f32.mxu0 0.0
    %813 = vmatmul.mubr.f32.gmra.mxu0 %v721
    %v814 = vpop.f32.mrf.mxu0
    %v815 = vadd.f32 %v703, %v814
    %v816 = vpop.f32.mrf.mxu0
    %817 = vdwg.mxu0
    %v818 = vpack.c.bf16 %v790, %v790
    %v819 = vpack.c.bf16 %v795, %v795
    %v820 = vpack.c.bf16 %v800, %v800
    %v821 = vpack.c.bf16 %v805, %v805
    %v822 = vpack.c.bf16 %v810, %v810
    %v823 = vpack.c.bf16 %v815, %v815
    %v825 = vsel %vm132, %v818, 0
    %827 = vmatprep.subr.bf16.mxu0 0
    %828 = vmatpush1.bf16.msra.mxu0 0
    %829 = vmatprep.subr.bf16.mxu0 0
    %830 = vmatpush1.bf16.msra.mxu0 0
    %831 = vmatprep.subr.bf16.mxu0 0
    %832 = vmatpush1.bf16.msra.mxu0 0
    %833 = vmatprep.subr.bf16.mxu0 0
    %834 = vmatpush1.bf16.msra.mxu0 0
    %835 = vmatprep.subr.bf16.mxu0 0
    %836 = vmatpush1.bf16.msra.mxu0 0
    %837 = vmatprep.subr.bf16.mxu0 0
    %838 = vmatpush1.bf16.msra.mxu0 0
    %839 = vmatprep.subr.bf16.mxu0 0
    %840 = vmatpush1.bf16.msra.mxu0 0
    %841 = vmatprep.subr.bf16.mxu0 0
    %842 = vmatpush1.bf16.msra.mxu0 %v825
    %843 = vmatprep.subr.bf16.mxu0 0
    %844 = vmatpush2.bf16.msra.mxu0 0
    %845 = vmatprep.subr.bf16.mxu0 0
    %846 = vmatpush2.bf16.msra.mxu0 0
    %847 = vmatprep.subr.bf16.mxu0 0
    %848 = vmatpush2.bf16.msra.mxu0 0
    %849 = vmatprep.subr.bf16.mxu0 0
    %850 = vmatpush2.bf16.msra.mxu0 0
    %851 = vmatprep.subr.bf16.mxu0 0
    %852 = vmatpush2.bf16.msra.mxu0 0
    %853 = vmatprep.subr.bf16.mxu0 0
    %854 = vmatpush2.bf16.msra.mxu0 0
    %855 = vmatprep.subr.bf16.mxu0 0
    %856 = vmatpush2.bf16.msra.mxu0 0
    %857 = vmatprep.subr.bf16.mxu0 0
    %858 = vmatpush2.bf16.msra.mxu0 0
    %859 = vmatprep.mubr.bf16.mxu0 0
    %860 = vmatmul.mubr.bf16.gmra.mxu0 %v130
    %v861 = vpop.f32.mrf.mxu0
    %v862 = vadd.f32 0.0, %v861
    %v863 = vpop.f32.mrf.mxu0
    %v864 = vpop.f32.mrf.mxu0
    %v865 = vpop.f32.mrf.mxu0
    %866 = vdwg.mxu0
    %v868 = vsel %vm132, %v819, 0
    %870 = vmatprep.subr.bf16.mxu0 0
    %871 = vmatpush1.bf16.msra.mxu0 0
    %872 = vmatprep.subr.bf16.mxu0 0
    %873 = vmatpush1.bf16.msra.mxu0 0
    %874 = vmatprep.subr.bf16.mxu0 0
    %875 = vmatpush1.bf16.msra.mxu0 0
    %876 = vmatprep.subr.bf16.mxu0 0
    %877 = vmatpush1.bf16.msra.mxu0 0
    %878 = vmatprep.subr.bf16.mxu0 0
    %879 = vmatpush1.bf16.msra.mxu0 0
    %880 = vmatprep.subr.bf16.mxu0 0
    %881 = vmatpush1.bf16.msra.mxu0 0
    %882 = vmatprep.subr.bf16.mxu0 0
    %883 = vmatpush1.bf16.msra.mxu0 0
    %884 = vmatprep.subr.bf16.mxu0 0
    %885 = vmatpush1.bf16.msra.mxu0 %v868
    %886 = vmatprep.subr.bf16.mxu0 0
    %887 = vmatpush2.bf16.msra.mxu0 0
    %888 = vmatprep.subr.bf16.mxu0 0
    %889 = vmatpush2.bf16.msra.mxu0 0
    %890 = vmatprep.subr.bf16.mxu0 0
    %891 = vmatpush2.bf16.msra.mxu0 0
    %892 = vmatprep.subr.bf16.mxu0 0
    %893 = vmatpush2.bf16.msra.mxu0 0
    %894 = vmatprep.subr.bf16.mxu0 0
    %895 = vmatpush2.bf16.msra.mxu0 0
    %896 = vmatprep.subr.bf16.mxu0 0
    %897 = vmatpush2.bf16.msra.mxu0 0
    %898 = vmatprep.subr.bf16.mxu0 0
    %899 = vmatpush2.bf16.msra.mxu0 0
    %900 = vmatprep.subr.bf16.mxu0 0
    %901 = vmatpush2.bf16.msra.mxu0 0
    %902 = vmatprep.mubr.bf16.mxu0 0
    %903 = vmatmul.mubr.bf16.gmra.mxu0 %v176
    %v904 = vpop.f32.mrf.mxu0
    %v905 = vadd.f32 0.0, %v904
    %v906 = vpop.f32.mrf.mxu0
    %v907 = vpop.f32.mrf.mxu0
    %v908 = vpop.f32.mrf.mxu0
    %909 = vdwg.mxu0
    %v911 = vsel %vm132, %v820, 0
    %913 = vmatprep.subr.bf16.mxu0 0
    %914 = vmatpush1.bf16.msra.mxu0 0
    %915 = vmatprep.subr.bf16.mxu0 0
    %916 = vmatpush1.bf16.msra.mxu0 0
    %917 = vmatprep.subr.bf16.mxu0 0
    %918 = vmatpush1.bf16.msra.mxu0 0
    %919 = vmatprep.subr.bf16.mxu0 0
    %920 = vmatpush1.bf16.msra.mxu0 0
    %921 = vmatprep.subr.bf16.mxu0 0
    %922 = vmatpush1.bf16.msra.mxu0 0
    %923 = vmatprep.subr.bf16.mxu0 0
    %924 = vmatpush1.bf16.msra.mxu0 0
    %925 = vmatprep.subr.bf16.mxu0 0
    %926 = vmatpush1.bf16.msra.mxu0 0
    %927 = vmatprep.subr.bf16.mxu0 0
    %928 = vmatpush1.bf16.msra.mxu0 %v911
    %929 = vmatprep.subr.bf16.mxu0 0
    %930 = vmatpush2.bf16.msra.mxu0 0
    %931 = vmatprep.subr.bf16.mxu0 0
    %932 = vmatpush2.bf16.msra.mxu0 0
    %933 = vmatprep.subr.bf16.mxu0 0
    %934 = vmatpush2.bf16.msra.mxu0 0
    %935 = vmatprep.subr.bf16.mxu0 0
    %936 = vmatpush2.bf16.msra.mxu0 0
    %937 = vmatprep.subr.bf16.mxu0 0
    %938 = vmatpush2.bf16.msra.mxu0 0
    %939 = vmatprep.subr.bf16.mxu0 0
    %940 = vmatpush2.bf16.msra.mxu0 0
    %941 = vmatprep.subr.bf16.mxu0 0
    %942 = vmatpush2.bf16.msra.mxu0 0
    %943 = vmatprep.subr.bf16.mxu0 0
    %944 = vmatpush2.bf16.msra.mxu0 0
    %945 = vmatprep.mubr.bf16.mxu0 0
    %946 = vmatmul.mubr.bf16.gmra.mxu0 %v221
    %v947 = vpop.f32.mrf.mxu0
    %v948 = vadd.f32 0.0, %v947
    %v949 = vpop.f32.mrf.mxu0
    %v950 = vpop.f32.mrf.mxu0
    %v951 = vpop.f32.mrf.mxu0
    %952 = vdwg.mxu0
    %v954 = vsel %vm132, %v821, 0
    %956 = vmatprep.subr.bf16.mxu0 0
    %957 = vmatpush1.bf16.msra.mxu0 0
    %958 = vmatprep.subr.bf16.mxu0 0
    %959 = vmatpush1.bf16.msra.mxu0 0
    %960 = vmatprep.subr.bf16.mxu0 0
    %961 = vmatpush1.bf16.msra.mxu0 0
    %962 = vmatprep.subr.bf16.mxu0 0
    %963 = vmatpush1.bf16.msra.mxu0 0
    %964 = vmatprep.subr.bf16.mxu0 0
    %965 = vmatpush1.bf16.msra.mxu0 0
    %966 = vmatprep.subr.bf16.mxu0 0
    %967 = vmatpush1.bf16.msra.mxu0 0
    %968 = vmatprep.subr.bf16.mxu0 0
    %969 = vmatpush1.bf16.msra.mxu0 0
    %970 = vmatprep.subr.bf16.mxu0 0
    %971 = vmatpush1.bf16.msra.mxu0 %v954
    %972 = vmatprep.subr.bf16.mxu0 0
    %973 = vmatpush2.bf16.msra.mxu0 0
    %974 = vmatprep.subr.bf16.mxu0 0
    %975 = vmatpush2.bf16.msra.mxu0 0
    %976 = vmatprep.subr.bf16.mxu0 0
    %977 = vmatpush2.bf16.msra.mxu0 0
    %978 = vmatprep.subr.bf16.mxu0 0
    %979 = vmatpush2.bf16.msra.mxu0 0
    %980 = vmatprep.subr.bf16.mxu0 0
    %981 = vmatpush2.bf16.msra.mxu0 0
    %982 = vmatprep.subr.bf16.mxu0 0
    %983 = vmatpush2.bf16.msra.mxu0 0
    %984 = vmatprep.subr.bf16.mxu0 0
    %985 = vmatpush2.bf16.msra.mxu0 0
    %986 = vmatprep.subr.bf16.mxu0 0
    %987 = vmatpush2.bf16.msra.mxu0 0
    %988 = vmatprep.mubr.bf16.mxu0 0
    %989 = vmatmul.mubr.bf16.gmra.mxu0 %v266
    %v990 = vpop.f32.mrf.mxu0
    %v991 = vadd.f32 0.0, %v990
    %v992 = vpop.f32.mrf.mxu0
    %v993 = vpop.f32.mrf.mxu0
    %v994 = vpop.f32.mrf.mxu0
    %995 = vdwg.mxu0
    %v997 = vsel %vm132, %v822, 0
    %999 = vmatprep.subr.bf16.mxu0 0
    %1000 = vmatpush1.bf16.msra.mxu0 0
    %1001 = vmatprep.subr.bf16.mxu0 0
    %1002 = vmatpush1.bf16.msra.mxu0 0
    %1003 = vmatprep.subr.bf16.mxu0 0
    %1004 = vmatpush1.bf16.msra.mxu0 0
    %1005 = vmatprep.subr.bf16.mxu0 0
    %1006 = vmatpush1.bf16.msra.mxu0 0
    %1007 = vmatprep.subr.bf16.mxu0 0
    %1008 = vmatpush1.bf16.msra.mxu0 0
    %1009 = vmatprep.subr.bf16.mxu0 0
    %1010 = vmatpush1.bf16.msra.mxu0 0
    %1011 = vmatprep.subr.bf16.mxu0 0
    %1012 = vmatpush1.bf16.msra.mxu0 0
    %1013 = vmatprep.subr.bf16.mxu0 0
    %1014 = vmatpush1.bf16.msra.mxu0 %v997
    %1015 = vmatprep.subr.bf16.mxu0 0
    %1016 = vmatpush2.bf16.msra.mxu0 0
    %1017 = vmatprep.subr.bf16.mxu0 0
    %1018 = vmatpush2.bf16.msra.mxu0 0
    %1019 = vmatprep.subr.bf16.mxu0 0
    %1020 = vmatpush2.bf16.msra.mxu0 0
    %1021 = vmatprep.subr.bf16.mxu0 0
    %1022 = vmatpush2.bf16.msra.mxu0 0
    %1023 = vmatprep.subr.bf16.mxu0 0
    %1024 = vmatpush2.bf16.msra.mxu0 0
    %1025 = vmatprep.subr.bf16.mxu0 0
    %1026 = vmatpush2.bf16.msra.mxu0 0
    %1027 = vmatprep.subr.bf16.mxu0 0
    %1028 = vmatpush2.bf16.msra.mxu0 0
    %1029 = vmatprep.subr.bf16.mxu0 0
    %1030 = vmatpush2.bf16.msra.mxu0 0
    %1031 = vmatprep.mubr.bf16.mxu0 0
    %1032 = vmatmul.mubr.bf16.gmra.mxu0 %v311
    %v1033 = vpop.f32.mrf.mxu0
    %v1034 = vadd.f32 0.0, %v1033
    %v1035 = vpop.f32.mrf.mxu0
    %v1036 = vpop.f32.mrf.mxu0
    %v1037 = vpop.f32.mrf.mxu0
    %1038 = vdwg.mxu0
    %v1040 = vsel %vm132, %v823, 0
    %1042 = vmatprep.subr.bf16.mxu0 0
    %1043 = vmatpush1.bf16.msra.mxu0 0
    %1044 = vmatprep.subr.bf16.mxu0 0
    %1045 = vmatpush1.bf16.msra.mxu0 0
    %1046 = vmatprep.subr.bf16.mxu0 0
    %1047 = vmatpush1.bf16.msra.mxu0 0
    %1048 = vmatprep.subr.bf16.mxu0 0
    %1049 = vmatpush1.bf16.msra.mxu0 0
    %1050 = vmatprep.subr.bf16.mxu0 0
    %1051 = vmatpush1.bf16.msra.mxu0 0
    %1052 = vmatprep.subr.bf16.mxu0 0
    %1053 = vmatpush1.bf16.msra.mxu0 0
    %1054 = vmatprep.subr.bf16.mxu0 0
    %1055 = vmatpush1.bf16.msra.mxu0 0
    %1056 = vmatprep.subr.bf16.mxu0 0
    %1057 = vmatpush1.bf16.msra.mxu0 %v1040
    %1058 = vmatprep.subr.bf16.mxu0 0
    %1059 = vmatpush2.bf16.msra.mxu0 0
    %1060 = vmatprep.subr.bf16.mxu0 0
    %1061 = vmatpush2.bf16.msra.mxu0 0
    %1062 = vmatprep.subr.bf16.mxu0 0
    %1063 = vmatpush2.bf16.msra.mxu0 0
    %1064 = vmatprep.subr.bf16.mxu0 0
    %1065 = vmatpush2.bf16.msra.mxu0 0
    %1066 = vmatprep.subr.bf16.mxu0 0
    %1067 = vmatpush2.bf16.msra.mxu0 0
    %1068 = vmatprep.subr.bf16.mxu0 0
    %1069 = vmatpush2.bf16.msra.mxu0 0
    %1070 = vmatprep.subr.bf16.mxu0 0
    %1071 = vmatpush2.bf16.msra.mxu0 0
    %1072 = vmatprep.subr.bf16.mxu0 0
    %1073 = vmatpush2.bf16.msra.mxu0 0
    %1074 = vmatprep.mubr.bf16.mxu0 0
    %1075 = vmatmul.mubr.bf16.gmra.mxu0 %v356
    %v1076 = vpop.f32.mrf.mxu0
    %v1077 = vadd.f32 0.0, %v1076
    %v1078 = vpop.f32.mrf.mxu0
    %v1079 = vpop.f32.mrf.mxu0
    %v1080 = vpop.f32.mrf.mxu0
    %1081 = vdwg.mxu0
    %v1082 = vmul.f32 %v862, %v415
    %v1083 = vmul.f32 %v905, %v420
    %v1084 = vmul.f32 %v948, %v425
    %v1085 = vmul.f32 %v991, %v430
    %v1086 = vmul.f32 %v1034, %v435
    %v1087 = vmul.f32 %v1077, %v440
    %1094 = vrot.lane.b32.xlu0 %v790, 16
    %v1095 = vpop.permute.xlu0 %1094
    %1096 = vrot.lane.b32.xlu0 %v795, 16
    %v1097 = vpop.permute.xlu0 %1096
    %1098 = vrot.lane.b32.xlu0 %v800, 16
    %v1099 = vpop.permute.xlu0 %1098
    %1100 = vrot.lane.b32.xlu0 %v805, 16
    %v1101 = vpop.permute.xlu0 %1100
    %1102 = vrot.lane.b32.xlu0 %v810, 16
    %v1103 = vpop.permute.xlu0 %1102
    %1104 = vrot.lane.b32.xlu0 %v815, 16
    %v1105 = vpop.permute.xlu0 %1104
    %v1112 = vsel %vm114, %v1082, %v1095
    %v1113 = vsel %vm114, %v1083, %v1097
    %v1114 = vsel %vm114, %v1084, %v1099
    %v1115 = vsel %vm114, %v1085, %v1101
    %v1116 = vsel %vm114, %v1086, %v1103
    %v1117 = vsel %vm114, %v1087, %v1105
    %v1118 = vld [vmem:[#allocation8] sm:$0xff]
    %v1119 = vld [vmem:[#allocation8 + $0x8] sm:$0xff]
    %v1120 = vld [vmem:[#allocation8 + $0x10] sm:$0xff]
    %v1121 = vld [vmem:[#allocation8 + $0x18] sm:$0xff]
    %v1122 = vld [vmem:[%s7] sm:$0x1]
    %v1124 = vlaneseq
    %v1125 = vshrl.u32 %v1124, 7
    %v1126 = vsub.s32 0, %v1125
    %v1127 = vrot.slane %v1122, %v1126
    %v1130 = vsel %vm504, %v1112, 0
    %v1133 = vsel %vm504, %v1113, 0
    %v1136 = vsel %vm504, %v1114, 0
    %v1139 = vsel %vm504, %v1115, 0
    %v1142 = vsel %vm504, %v1116, 0
    %v1145 = vsel %vm504, %v1117, 0
    %1147 = vmatprep.subr.mxu0 0.0
    %1148 = vmatpush1.msra.mxu0 0.0
    %1149 = vmatprep.subr.mxu0 0.0
    %1150 = vmatpush1.msra.mxu0 0.0
    %1151 = vmatprep.subr.mxu0 0.0
    %1152 = vmatpush1.msra.mxu0 0.0
    %1153 = vmatprep.subr.mxu0 0.0
    %1154 = vmatpush1.msra.mxu0 0.0
    %1155 = vmatprep.subr.mxu0 0.0
    %1156 = vmatpush1.msra.mxu0 0.0
    %1157 = vmatprep.subr.mxu0 0.0
    %1158 = vmatpush1.msra.mxu0 0.0
    %1159 = vmatprep.subr.mxu0 0.0
    %1160 = vmatpush1.msra.mxu0 0.0
    %1161 = vmatprep.subr.mxu0 0.0
    %1162 = vmatpush1.msra.mxu0 0.0
    %1163 = vmatprep.subr.mxu0 0.0
    %1164 = vmatpush1.msra.mxu0 0.0
    %1165 = vmatprep.subr.mxu0 0.0
    %1166 = vmatpush1.msra.mxu0 0.0
    %1167 = vmatprep.subr.mxu0 0.0
    %1168 = vmatpush1.msra.mxu0 0.0
    %1169 = vmatprep.subr.mxu0 0.0
    %1170 = vmatpush1.msra.mxu0 0.0
    %1171 = vmatprep.subr.mxu0 0.0
    %1172 = vmatpush1.msra.mxu0 %v1121
    %1173 = vmatprep.subr.mxu0 0.0
    %1174 = vmatpush1.msra.mxu0 %v1120
    %1175 = vmatprep.subr.mxu0 0.0
    %1176 = vmatpush1.msra.mxu0 %v1119
    %1177 = vmatprep.subr.mxu0 0.0
    %1178 = vmatpush1.msra.mxu0 %v1118
    %1179 = vmatprep.subr.mxu0 0.0
    %1180 = vmatpush2.msra.mxu0 0.0
    %1181 = vmatprep.subr.mxu0 0.0
    %1182 = vmatpush2.msra.mxu0 0.0
    %1183 = vmatprep.subr.mxu0 0.0
    %1184 = vmatpush2.msra.mxu0 0.0
    %1185 = vmatprep.subr.mxu0 0.0
    %1186 = vmatpush2.msra.mxu0 0.0
    %1187 = vmatprep.subr.mxu0 0.0
    %1188 = vmatpush2.msra.mxu0 0.0
    %1189 = vmatprep.subr.mxu0 0.0
    %1190 = vmatpush2.msra.mxu0 0.0
    %1191 = vmatprep.subr.mxu0 0.0
    %1192 = vmatpush2.msra.mxu0 0.0
    %1193 = vmatprep.subr.mxu0 0.0
    %1194 = vmatpush2.msra.mxu0 0.0
    %1195 = vmatprep.subr.mxu0 0.0
    %1196 = vmatpush2.msra.mxu0 0.0
    %1197 = vmatprep.subr.mxu0 0.0
    %1198 = vmatpush2.msra.mxu0 0.0
    %1199 = vmatprep.subr.mxu0 0.0
    %1200 = vmatpush2.msra.mxu0 0.0
    %1201 = vmatprep.subr.mxu0 0.0
    %1202 = vmatpush2.msra.mxu0 0.0
    %1203 = vmatprep.subr.mxu0 0.0
    %1204 = vmatpush2.msra.mxu0 0.0
    %1205 = vmatprep.subr.mxu0 0.0
    %1206 = vmatpush2.msra.mxu0 0.0
    %1207 = vmatprep.subr.mxu0 0.0
    %1208 = vmatpush2.msra.mxu0 0.0
    %1209 = vmatprep.subr.mxu0 0.0
    %1210 = vmatpush2.msra.mxu0 0.0
    %1211 = vmatprep.mubr.f32.mxu0 0.0
    %1212 = vmatmul.mubr.f32.gmra.mxu0 %v1130
    %v1213 = vpop.f32.mrf.mxu0
    %v1214 = vadd.f32 %v1127, %v1213
    %v1215 = vpop.f32.mrf.mxu0
    %1216 = vmatprep.mubr.f32.mxu0 0.0
    %1217 = vmatmul.mubr.f32.gmra.mxu0 %v1133
    %v1218 = vpop.f32.mrf.mxu0
    %v1219 = vadd.f32 %v1127, %v1218
    %v1220 = vpop.f32.mrf.mxu0
    %1221 = vmatprep.mubr.f32.mxu0 0.0
    %1222 = vmatmul.mubr.f32.gmra.mxu0 %v1136
    %v1223 = vpop.f32.mrf.mxu0
    %v1224 = vadd.f32 %v1127, %v1223
    %v1225 = vpop.f32.mrf.mxu0
    %1226 = vmatprep.mubr.f32.mxu0 0.0
    %1227 = vmatmul.mubr.f32.gmra.mxu0 %v1139
    %v1228 = vpop.f32.mrf.mxu0
    %v1229 = vadd.f32 %v1127, %v1228
    %v1230 = vpop.f32.mrf.mxu0
    %1231 = vmatprep.mubr.f32.mxu0 0.0
    %1232 = vmatmul.mubr.f32.gmra.mxu0 %v1142
    %v1233 = vpop.f32.mrf.mxu0
    %v1234 = vadd.f32 %v1127, %v1233
    %v1235 = vpop.f32.mrf.mxu0
    %1236 = vmatprep.mubr.f32.mxu0 0.0
    %1237 = vmatmul.mubr.f32.gmra.mxu0 %v1145
    %v1238 = vpop.f32.mrf.mxu0
    %v1239 = vadd.f32 %v1127, %v1238
    %v1240 = vpop.f32.mrf.mxu0
    %1241 = vdwg.mxu0
    %v1242 = vmax.f32 %v1214, 0.0
    %v1243 = vmax.f32 %v1219, 0.0
    %v1244 = vmax.f32 %v1224, 0.0
    %v1245 = vmax.f32 %v1229, 0.0
    %v1246 = vmax.f32 %v1234, 0.0
    %v1247 = vmax.f32 %v1239, 0.0
    %1248 = vset.pattern.permute.xlu0 2
    %1249 = vperm.xlu0 %1248, %v448
    %v1250 = vpop.permute.xlu0 %1249
    %1252 = vset.pattern.permute.xlu0 2
    %1253 = vperm.xlu0 %1252, %v449
    %v1254 = vpop.permute.xlu0 %1253
    %1256 = vset.pattern.permute.xlu0 2
    %1257 = vperm.xlu0 %1256, %v450
    %v1258 = vpop.permute.xlu0 %1257
    %1260 = vset.pattern.permute.xlu0 2
    %1261 = vperm.xlu0 %1260, %v451
    %v1262 = vpop.permute.xlu0 %1261
    %1264 = vset.pattern.permute.xlu0 2
    %1265 = vperm.xlu0 %1264, %v452
    %v1266 = vpop.permute.xlu0 %1265
    %1268 = vset.pattern.permute.xlu0 2
    %1269 = vperm.xlu0 %1268, %v453
    %v1270 = vpop.permute.xlu0 %1269
    %v1272 = vmul.f32 %v1242, %v1250
    %v1273 = vmul.f32 %v1243, %v1254
    %v1274 = vmul.f32 %v1244, %v1258
    %v1275 = vmul.f32 %v1245, %v1262
    %v1276 = vmul.f32 %v1246, %v1266
    %v1277 = vmul.f32 %v1247, %v1270
    %1278 = vset.pattern.permute.xlu0 3
    %1279 = vperm.xlu0 %1278, %v448
    %v1280 = vpop.permute.xlu0 %1279
    %1282 = vset.pattern.permute.xlu0 3
    %1283 = vperm.xlu0 %1282, %v449
    %v1284 = vpop.permute.xlu0 %1283
    %1286 = vset.pattern.permute.xlu0 3
    %1287 = vperm.xlu0 %1286, %v450
    %v1288 = vpop.permute.xlu0 %1287
    %1290 = vset.pattern.permute.xlu0 3
    %1291 = vperm.xlu0 %1290, %v451
    %v1292 = vpop.permute.xlu0 %1291
    %1294 = vset.pattern.permute.xlu0 3
    %1295 = vperm.xlu0 %1294, %v452
    %v1296 = vpop.permute.xlu0 %1295
    %1298 = vset.pattern.permute.xlu0 3
    %1299 = vperm.xlu0 %1298, %v453
    %v1300 = vpop.permute.xlu0 %1299
    %v1302 = vadd.f32 %v1272, %v1280
    %v1303 = vadd.f32 %v1273, %v1284
    %v1304 = vadd.f32 %v1274, %v1288
    %v1305 = vadd.f32 %v1275, %v1292
    %v1306 = vadd.f32 %v1276, %v1296
    %v1307 = vadd.f32 %v1277, %v1300
    %v1308 = vadd.f32 %v1302, %v590
    %v1309 = vadd.f32 %v1303, %v596
    %v1310 = vadd.f32 %v1304, %v602
    %v1311 = vadd.f32 %v1305, %v608
    %v1312 = vadd.f32 %v1306, %v614
    %v1313 = vadd.f32 %v1307, %v620
    %v1314 = vpack.c.bf16 %v1308, %v1308
    %v1315 = vpack.c.bf16 %v1309, %v1309
    %v1316 = vpack.c.bf16 %v1310, %v1310
    %v1317 = vpack.c.bf16 %v1311, %v1311
    %v1318 = vpack.c.bf16 %v1312, %v1312
    %v1319 = vpack.c.bf16 %v1313, %v1313
    %1320 = vst [vmem:[#allocation10] sm:$0xf] %v1314
    %1321 = vst [vmem:[#allocation10 + $0x4] sm:$0xf] %v1315
    %1322 = vst [vmem:[#allocation10 + $0x8] sm:$0xf] %v1316
    %1323 = vst [vmem:[#allocation10 + $0xc] sm:$0xf] %v1317
    %1324 = vst [vmem:[#allocation10 + $0x10] sm:$0xf] %v1318
    %1325 = vst [vmem:[#allocation10 + $0x14] sm:$0xf] %v1319
    // Predicated region
    $region54: #{tpu_custom_call.1} parent=1 // pred_check
      _
    $region55: #{tpu_custom_call.1} parent=1 // pred_check_branch
      %1327 = sbr.rel (0) target = $region57
    $region56: #{tpu_custom_call.1} parent=1 // pred_region
      %s1329 = ssub.s32 384, 384
      %1330 = vsyncadd [#allocation4], %s1329
      %s1331 = sshll.u32 [#allocation10], 4
      %s1332 = int_to_ptr.vmem [resolvable:$true] %s1331
      %1337 = dma.vmem_to_hbm [thread:$0]  %s1332, 384, %s9, [#allocation4], 64, 64, 4
    $region57: #{tpu_custom_call.1} parent=1 // pred_fallthru
      _
    // Predicated region
    $region58: #{tpu_custom_call.1} parent=1 // pred_check
      _
    $region59: #{tpu_custom_call.1} parent=1 // pred_check_branch
      %1339 = sbr.rel (0) target = $region61
    $region60: #{tpu_custom_call.1} parent=1 // pred_region
      %1340 = dma.done [#allocation4], 384
    $region61: #{tpu_custom_call.1} parent=1 // pred_fallthru
      _
    %1341 = vsyncpa [#allocation3], 1
    %1342 = vsyncpa [#allocation6], 1
    %1343 = vsyncpa [#allocation9], 1
    %1344 = vsyncpa [#allocation4], 1

</llo_original>
